<compile_context>
chip_gen: v5e
topology: v5e:2x2
jax: 0.10.0
libtpu: 0.0.40
codegen_flags: <defaults>
</compile_context>

<pallas_src>
import functools

import jax
import jax.numpy as jnp
from jax.experimental import pallas as pl
from jax.experimental.pallas import tpu as pltpu


def _round_up(x, m):
    return ((x + m - 1) // m) * m


# ----------------------------------------------------------------------------
# Fused kernel: multi-branch conv + ReLU + max-pool + highway + final Linear
# ----------------------------------------------------------------------------
def _disc_kernel(emb_ref, wc_ref, bc_ref, mask_ref,
                 w1_ref, b1_ref, w2_ref, b2_ref, wfc_ref, bfc_ref,
                 out_ref, *, f_max, s_pos):
    # emb_ref : (TB, S_tot, E)  bf16      wc_ref  : (f_max, E, F_pad) bf16
    # bc_ref  : (1, F_pad)      f32       mask_ref: (s_pos, F_pad)    f32
    # w1/w2   : (F_pad, F_pad)  bf16      b1/b2   : (1, F_pad)        f32
    # wfc_ref : (F_pad, NC_pad) bf16      bfc_ref : (1, NC_pad)       f32
    # out_ref : (TB, NC_pad)    f32
    emb = emb_ref[...]                                   # (TB, S_tot, E) bf16

    # ---- all conv branches as f_max wide matmuls (M=TB*s_pos, K=E, N=F_pad) --
    acc = None
    for j in range(f_max):                               # static unroll, small
        win = emb[:, j:j + s_pos, :]                     # (TB, s_pos, E)
        part = jax.lax.dot_general(
            win, wc_ref[j],
            dimension_numbers=(((2,), (0,)), ((), ())),
            preferred_element_type=jnp.float32)          # (TB, s_pos, F_pad) f32
        acc = part if acc is None else acc + part        # first iter = init

    acc = jnp.maximum(acc + bc_ref[...][None, :, :], 0.0)   # conv bias + ReLU
    acc = acc * mask_ref[...][None, :, :]                   # zero invalid positions
    pooled = jnp.max(acc, axis=1)                            # (TB, F_pad) max-pool

    # ---- highway + final Linear (padded columns stay exactly zero) ----------
    p16 = pooled.astype(jnp.bfloat16)
    g = jnp.maximum(
        jnp.dot(p16, w1_ref[...], preferred_element_type=jnp.float32)
        + b1_ref[...], 0.0)
    t = jax.nn.sigmoid(
        jnp.dot(p16, w2_ref[...], preferred_element_type=jnp.float32)
        + b2_ref[...])
    h = g * t + (1.0 - t) * pooled
    # TODO(synk): nn.Dropout is identity here (eval-mode semantics).
    out_ref[...] = (
        jnp.dot(h.astype(jnp.bfloat16), wfc_ref[...],
                preferred_element_type=jnp.float32) + bfc_ref[...])


def _disc_pallas(emb, fused, tile_b):
    b_pad, s_tot, e = emb.shape
    f_max = fused["f_max"]
    s_pos = fused["s_pos"]
    f_padc = fused["wc"].shape[-1]
    nc_pad = fused["wfc"].shape[-1]

    def full(shape):
        return pl.BlockSpec(shape, lambda i, _shape=shape: (0,) * len(_shape))

    kernel = functools.partial(_disc_kernel, f_max=f_max, s_pos=s_pos)
    grid_spec = pltpu.PrefetchScalarGridSpec(
        num_scalar_prefetch=0,
        grid=(b_pad // tile_b,),
        in_specs=[
            pl.BlockSpec((tile_b, s_tot, e), lambda i: (i, 0, 0)),  # embeddings
            full((f_max, e, f_padc)),                               # packed conv W
            full((1, f_padc)),                                      # packed conv b
            full((s_pos, f_padc)),                                  # valid-pos mask
            full((f_padc, f_padc)),                                 # highway W1
            full((1, f_padc)),                                      # highway b1
            full((f_padc, f_padc)),                                 # highway W2
            full((1, f_padc)),                                      # highway b2
            full((f_padc, nc_pad)),                                 # fc W
            full((1, nc_pad)),                                      # fc b
        ],
        out_specs=pl.BlockSpec((tile_b, nc_pad), lambda i: (i, 0)),
    )
    return pl.pallas_call(
        kernel,
        out_shape=jax.ShapeDtypeStruct((b_pad, nc_pad), jnp.float32),
        grid_spec=grid_spec,
        compiler_params=pltpu.CompilerParams(
            dimension_semantics=("parallel",)),
    )(emb, fused["wc"], fused["bc"], fused["mask"],
      fused["w1"], fused["b1"], fused["w2"], fused["b2"],
      fused["wfc"], fused["bfc"])


# ----------------------------------------------------------------------------
# Parameter packing (all branches -> one lane-dense weight, 128-padded lanes)
# ----------------------------------------------------------------------------
def _prepare_fused_params(params, seq_len):
    convs = params["convs"]
    f_sizes = [w.shape[0] for (w, _) in convs]
    f_max, f_min = max(f_sizes), min(f_sizes)
    e = convs[0][0].shape[1]
    total_filters = sum(w.shape[2] for (w, _) in convs)
    f_padc = _round_up(total_filters, 128)
    s_pos = seq_len - f_min + 1
    num_class = params["fc_w"].shape[1]
    nc_pad = _round_up(num_class, 128)

    wc = jnp.zeros((f_max, e, f_padc), jnp.float32)
    bc = jnp.zeros((1, f_padc), jnp.float32)
    mask = jnp.zeros((s_pos, f_padc), jnp.float32)
    col = 0
    for (w, b) in convs:
        f, _, c = w.shape
        wc = wc.at[:f, :, col:col + c].set(w)
        bc = bc.at[:, col:col + c].set(b)
        mask = mask.at[:seq_len - f + 1, col:col + c].set(1.0)
        col += c

    def pad2(m, rows, cols):
        out = jnp.zeros((rows, cols), jnp.float32)
        return out.at[:m.shape[0], :m.shape[1]].set(m)

    return {
        "f_max": f_max, "s_pos": s_pos, "num_class": num_class,
        "wc": wc.astype(jnp.bfloat16), "bc": bc, "mask": mask,
        "w1": pad2(params["hw_w1"], f_padc, f_padc).astype(jnp.bfloat16),
        "b1": pad2(params["hw_b1"], 1, f_padc),
        "w2": pad2(params["hw_w2"], f_padc, f_padc).astype(jnp.bfloat16),
        "b2": pad2(params["hw_b2"], 1, f_padc),
        "wfc": pad2(params["fc_w"], f_padc, nc_pad).astype(jnp.bfloat16),
        "bfc": pad2(params["fc_b"], 1, nc_pad),
    }


# ----------------------------------------------------------------------------
# Full Discriminator forward
# ----------------------------------------------------------------------------
@jax.jit
def discriminator_forward(tokens, params):
    batch, seq_len = tokens.shape
    fused = _prepare_fused_params(params, seq_len)
    f_max, s_pos = fused["f_max"], fused["s_pos"]
    s_tot = s_pos + f_max - 1

    # Embedding lookup (gather) is glue; done in plain JAX.
    emb = jnp.take(params["embedding"], tokens, axis=0)          # (B, S, E) f32
    e = emb.shape[-1]

    tile_b = min(128, _round_up(batch, 8))       # multiple of 8 sublane rows
    b_pad = _round_up(batch, tile_b)
    emb_p = jnp.zeros((b_pad, s_tot, e), jnp.bfloat16)
    emb_p = emb_p.at[:batch, :seq_len, :].set(emb.astype(jnp.bfloat16))

    out = _disc_pallas(emb_p, fused, tile_b)                     # (B_pad, NC_pad)
    return out[:batch, :fused["num_class"]]


# ----------------------------------------------------------------------------
# Parameter init + pure-JAX reference (for a correctness check in __main__)
# ----------------------------------------------------------------------------
def init_params(key, vocab_size, embed_size, filter_sizes, num_filters, num_class):
    total_filters = sum(num_filters)
    keys = jax.random.split(key, 8 + 2 * len(filter_sizes))
    ki = iter(range(len(keys)))

    def nrm(k, shape, scale=0.1):
        return (scale * jax.random.normal(keys[k], shape)).astype(jnp.float32)

    params = {"embedding": nrm(next(ki), (vocab_size, embed_size))}
    convs = []
    for f_size, num_f in zip(filter_sizes, num_filters):
        # PyTorch Conv2d weight is (C, 1, f, E); stored here as (f, E, C).
        convs.append((nrm(next(ki), (f_size, embed_size, num_f)),
                      nrm(next(ki), (1, num_f))))
    params["convs"] = convs
    # PyTorch Linear weight is (out, in); stored transposed as (in, out).
    params["hw_w1"] = nrm(next(ki), (total_filters, total_filters))
    params["hw_b1"] = nrm(next(ki), (1, total_filters))
    params["hw_w2"] = nrm(next(ki), (total_filters, total_filters))
    params["hw_b2"] = nrm(next(ki), (1, total_filters))
    params["fc_w"] = nrm(next(ki), (total_filters, num_class))
    params["fc_b"] = nrm(next(ki), (1, num_class))
    return params


def _reference_forward(tokens, params):
    emb = jnp.take(params["embedding"], tokens, axis=0)
    pooled = []
    for (w, b) in params["convs"]:
        f, _, _ = w.shape
        s_out = emb.shape[1] - f + 1
        acc = None
        for j in range(f):
            part = jnp.einsum("bse,ec->bsc", emb[:, j:j + s_out, :], w[j])
            acc = part if acc is None else acc + part
        acc = jnp.maximum(acc + b[None, :, :], 0.0)
        pooled.append(jnp.max(acc, axis=1))
    pred = jnp.concatenate(pooled, axis=1)
    g = jnp.maximum(pred @ params["hw_w1"] + params["hw_b1"], 0.0)
    t = jax.nn.sigmoid(pred @ params["hw_w2"] + params["hw_b2"])
    h = g * t + (1.0 - t) * pred
    return h @ params["fc_w"] + params["fc_b"]


if __name__ == "__main__":
    B = 2
    seq_len = 8
    vocab_size = 16
    embed_size = 32
    filter_sizes = (2, 3)
    num_filters = (8, 8)
    num_class = 2

    key = jax.random.PRNGKey(0)
    k_params, k_tokens = jax.random.split(key)
    params = init_params(k_params, vocab_size, embed_size,
                         filter_sizes, num_filters, num_class)
    tokens = jax.random.randint(k_tokens, (B, seq_len), 0, vocab_size,
                                dtype=jnp.int32)

    score = discriminator_forward(tokens, params)
    jax.block_until_ready(score)
    assert score.shape == (B, num_class)

    ref = _reference_forward(tokens, params)
    err = float(jnp.max(jnp.abs(score - ref)))
    assert err < 5e-2, f"max abs error vs reference: {err}"
    print("KERNEL_OK")
</pallas_src>

<mosaic_0001>
module attributes {stable_mosaic.version = 11 : i64} {
  func.func @_disc_kernel(%arg0: i32, %arg1: memref<8x9x32xbf16, #tpu.memory_space<vmem>>, %arg2: memref<3x32x128xbf16, #tpu.memory_space<vmem>>, %arg3: memref<1x128xf32, #tpu.memory_space<vmem>>, %arg4: memref<7x128xf32, #tpu.memory_space<vmem>>, %arg5: memref<128x128xbf16, #tpu.memory_space<vmem>>, %arg6: memref<1x128xf32, #tpu.memory_space<vmem>>, %arg7: memref<128x128xbf16, #tpu.memory_space<vmem>>, %arg8: memref<1x128xf32, #tpu.memory_space<vmem>>, %arg9: memref<128x128xbf16, #tpu.memory_space<vmem>>, %arg10: memref<1x128xf32, #tpu.memory_space<vmem>>, %arg11: memref<8x128xf32, #tpu.memory_space<vmem>>) attributes {dimension_semantics = [#tpu.dimension_semantics<parallel>], iteration_bounds = array<i64: 1>, scalar_prefetch = 0 : i64, scratch_operands = 0 : i64, tpu.core_type = #tpu.core_type<tc>, window_params = [{transform_indices = @transform_0, window_bounds = array<i64: 8, 9, 32>}, {pipeline_mode = #tpu.pipeline_mode<synchronous>, transform_indices = @transform_1, window_bounds = array<i64: 3, 32, 128>}, {pipeline_mode = #tpu.pipeline_mode<synchronous>, transform_indices = @transform_2, window_bounds = array<i64: 1, 128>}, {pipeline_mode = #tpu.pipeline_mode<synchronous>, transform_indices = @transform_3, window_bounds = array<i64: 7, 128>}, {pipeline_mode = #tpu.pipeline_mode<synchronous>, transform_indices = @transform_4, window_bounds = array<i64: 128, 128>}, {pipeline_mode = #tpu.pipeline_mode<synchronous>, transform_indices = @transform_5, window_bounds = array<i64: 1, 128>}, {pipeline_mode = #tpu.pipeline_mode<synchronous>, transform_indices = @transform_6, window_bounds = array<i64: 128, 128>}, {pipeline_mode = #tpu.pipeline_mode<synchronous>, transform_indices = @transform_7, window_bounds = array<i64: 1, 128>}, {pipeline_mode = #tpu.pipeline_mode<synchronous>, transform_indices = @transform_8, window_bounds = array<i64: 128, 128>}, {pipeline_mode = #tpu.pipeline_mode<synchronous>, transform_indices = @transform_9, window_bounds = array<i64: 1, 128>}, {transform_indices = @transform_10, window_bounds = array<i64: 8, 128>}]} {
    %c0 = arith.constant 0 : index
    %c0_0 = arith.constant 0 : index
    %c0_1 = arith.constant 0 : index
    %0 = vector.load %arg1[%c0, %c0_0, %c0_1] : memref<8x9x32xbf16, #tpu.memory_space<vmem>>, vector<8x9x32xbf16>
    %1 = vector.extract_strided_slice %0 {offsets = [0, 0, 0], sizes = [8, 7, 32], strides = [1, 1, 1]} : vector<8x9x32xbf16> to vector<8x7x32xbf16>
    %c0_2 = arith.constant 0 : index
    %c0_3 = arith.constant 0 : index
    %c0_4 = arith.constant 0 : index
    %2 = vector.load %arg2[%c0_2, %c0_3, %c0_4] : memref<3x32x128xbf16, #tpu.memory_space<vmem>>, vector<1x32x128xbf16>
    %3 = vector.shape_cast %2 : vector<1x32x128xbf16> to vector<32x128xbf16>
    %cst = arith.constant dense<0.000000e+00> : vector<8x7x128xf32>
    %4 = tpu.matmul %1, %3, %cst {dimension_numbers = #tpu.dot_dimension_numbers<[2], [0], [0, 1], [1], [0, 0, 0, 1, 1, 1], [], []>} : vector<8x7x32xbf16>, vector<32x128xbf16>, vector<8x7x128xf32> -> vector<8x7x128xf32>
    %5 = vector.extract_strided_slice %0 {offsets = [0, 1, 0], sizes = [8, 7, 32], strides = [1, 1, 1]} : vector<8x9x32xbf16> to vector<8x7x32xbf16>
    %c1 = arith.constant 1 : index
    %c0_5 = arith.constant 0 : index
    %c0_6 = arith.constant 0 : index
    %6 = vector.load %arg2[%c1, %c0_5, %c0_6] : memref<3x32x128xbf16, #tpu.memory_space<vmem>>, vector<1x32x128xbf16>
    %7 = vector.shape_cast %6 : vector<1x32x128xbf16> to vector<32x128xbf16>
    %cst_7 = arith.constant dense<0.000000e+00> : vector<8x7x128xf32>
    %8 = tpu.matmul %5, %7, %cst_7 {dimension_numbers = #tpu.dot_dimension_numbers<[2], [0], [0, 1], [1], [0, 0, 0, 1, 1, 1], [], []>} : vector<8x7x32xbf16>, vector<32x128xbf16>, vector<8x7x128xf32> -> vector<8x7x128xf32>
    %9 = arith.addf %4, %8 : vector<8x7x128xf32>
    %10 = vector.extract_strided_slice %0 {offsets = [0, 2, 0], sizes = [8, 7, 32], strides = [1, 1, 1]} : vector<8x9x32xbf16> to vector<8x7x32xbf16>
    %c2 = arith.constant 2 : index
    %c0_8 = arith.constant 0 : index
    %c0_9 = arith.constant 0 : index
    %11 = vector.load %arg2[%c2, %c0_8, %c0_9] : memref<3x32x128xbf16, #tpu.memory_space<vmem>>, vector<1x32x128xbf16>
    %12 = vector.shape_cast %11 : vector<1x32x128xbf16> to vector<32x128xbf16>
    %cst_10 = arith.constant dense<0.000000e+00> : vector<8x7x128xf32>
    %13 = tpu.matmul %10, %12, %cst_10 {dimension_numbers = #tpu.dot_dimension_numbers<[2], [0], [0, 1], [1], [0, 0, 0, 1, 1, 1], [], []>} : vector<8x7x32xbf16>, vector<32x128xbf16>, vector<8x7x128xf32> -> vector<8x7x128xf32>
    %14 = arith.addf %9, %13 : vector<8x7x128xf32>
    %c0_11 = arith.constant 0 : index
    %c0_12 = arith.constant 0 : index
    %15 = vector.load %arg3[%c0_11, %c0_12] : memref<1x128xf32, #tpu.memory_space<vmem>>, vector<1x128xf32>
    %16 = vector.shape_cast %15 : vector<1x128xf32> to vector<1x1x128xf32>
    %17 = vector.broadcast %16 : vector<1x1x128xf32> to vector<8x7x128xf32>
    %18 = arith.addf %14, %17 : vector<8x7x128xf32>
    %cst_13 = arith.constant 0.000000e+00 : f32
    %19 = vector.broadcast %cst_13 : f32 to vector<8x7x128xf32>
    %20 = arith.maximumf %18, %19 : vector<8x7x128xf32>
    %c0_14 = arith.constant 0 : index
    %c0_15 = arith.constant 0 : index
    %21 = vector.load %arg4[%c0_14, %c0_15] : memref<7x128xf32, #tpu.memory_space<vmem>>, vector<7x128xf32>
    %22 = vector.shape_cast %21 : vector<7x128xf32> to vector<1x7x128xf32>
    %23 = vector.broadcast %22 : vector<1x7x128xf32> to vector<8x7x128xf32>
    %24 = arith.mulf %20, %23 : vector<8x7x128xf32>
    %cst_16 = arith.constant dense<0xFF800000> : vector<8x128xf32>
    %25 = vector.multi_reduction <maximumf>, %24, %cst_16 [1] : vector<8x7x128xf32> to vector<8x128xf32>
    %26 = arith.truncf %25 : vector<8x128xf32> to vector<8x128xbf16>
    %c0_17 = arith.constant 0 : index
    %c0_18 = arith.constant 0 : index
    %27 = vector.load %arg5[%c0_17, %c0_18] : memref<128x128xbf16, #tpu.memory_space<vmem>>, vector<128x128xbf16>
    %cst_19 = arith.constant dense<0.000000e+00> : vector<8x128xf32>
    %28 = tpu.matmul %26, %27, %cst_19 {dimension_numbers = #tpu.dot_dimension_numbers<[1], [0], [0], [1], [0, 0, 1, 1], [], []>} : vector<8x128xbf16>, vector<128x128xbf16>, vector<8x128xf32> -> vector<8x128xf32>
    %c0_20 = arith.constant 0 : index
    %c0_21 = arith.constant 0 : index
    %29 = vector.load %arg6[%c0_20, %c0_21] : memref<1x128xf32, #tpu.memory_space<vmem>>, vector<1x128xf32>
    %30 = vector.broadcast %29 : vector<1x128xf32> to vector<8x128xf32>
    %31 = arith.addf %28, %30 : vector<8x128xf32>
    %cst_22 = arith.constant 0.000000e+00 : f32
    %32 = vector.broadcast %cst_22 : f32 to vector<8x128xf32>
    %33 = arith.maximumf %31, %32 : vector<8x128xf32>
    %c0_23 = arith.constant 0 : index
    %c0_24 = arith.constant 0 : index
    %34 = vector.load %arg7[%c0_23, %c0_24] : memref<128x128xbf16, #tpu.memory_space<vmem>>, vector<128x128xbf16>
    %cst_25 = arith.constant dense<0.000000e+00> : vector<8x128xf32>
    %35 = tpu.matmul %26, %34, %cst_25 {dimension_numbers = #tpu.dot_dimension_numbers<[1], [0], [0], [1], [0, 0, 1, 1], [], []>} : vector<8x128xbf16>, vector<128x128xbf16>, vector<8x128xf32> -> vector<8x128xf32>
    %c0_26 = arith.constant 0 : index
    %c0_27 = arith.constant 0 : index
    %36 = vector.load %arg8[%c0_26, %c0_27] : memref<1x128xf32, #tpu.memory_space<vmem>>, vector<1x128xf32>
    %37 = vector.broadcast %36 : vector<1x128xf32> to vector<8x128xf32>
    %38 = arith.addf %35, %37 : vector<8x128xf32>
    %39 = arith.negf %38 : vector<8x128xf32>
    %40 = math.exp %39 : vector<8x128xf32>
    %cst_28 = arith.constant 1.000000e+00 : f32
    %41 = vector.broadcast %cst_28 : f32 to vector<8x128xf32>
    %42 = arith.addf %41, %40 : vector<8x128xf32>
    %43 = arith.divf %41, %42 : vector<8x128xf32>
    %44 = arith.mulf %33, %43 : vector<8x128xf32>
    %cst_29 = arith.constant 1.000000e+00 : f32
    %45 = vector.broadcast %cst_29 : f32 to vector<8x128xf32>
    %46 = arith.subf %45, %43 : vector<8x128xf32>
    %47 = arith.mulf %46, %25 : vector<8x128xf32>
    %48 = arith.addf %44, %47 : vector<8x128xf32>
    %49 = arith.truncf %48 : vector<8x128xf32> to vector<8x128xbf16>
    %c0_30 = arith.constant 0 : index
    %c0_31 = arith.constant 0 : index
    %50 = vector.load %arg9[%c0_30, %c0_31] : memref<128x128xbf16, #tpu.memory_space<vmem>>, vector<128x128xbf16>
    %cst_32 = arith.constant dense<0.000000e+00> : vector<8x128xf32>
    %51 = tpu.matmul %49, %50, %cst_32 {dimension_numbers = #tpu.dot_dimension_numbers<[1], [0], [0], [1], [0, 0, 1, 1], [], []>} : vector<8x128xbf16>, vector<128x128xbf16>, vector<8x128xf32> -> vector<8x128xf32>
    %c0_33 = arith.constant 0 : index
    %c0_34 = arith.constant 0 : index
    %52 = vector.load %arg10[%c0_33, %c0_34] : memref<1x128xf32, #tpu.memory_space<vmem>>, vector<1x128xf32>
    %53 = vector.broadcast %52 : vector<1x128xf32> to vector<8x128xf32>
    %54 = arith.addf %51, %53 : vector<8x128xf32>
    %c0_35 = arith.constant 0 : index
    %c0_36 = arith.constant 0 : index
    %55 = vector.load %arg11[%c0_35, %c0_36] : memref<8x128xf32, #tpu.memory_space<vmem>>, vector<8x128xf32>
    tpu.vector_store %arg11[%c0_35, %c0_36], %54 {strides = array<i32>} : memref<8x128xf32, #tpu.memory_space<vmem>>, vector<8x128xf32>,
    return
  }
  func.func @transform_0(%arg0: i32) -> (i32, i32, i32) {
    %c0_i32 = arith.constant 0 : i32
    %c0_i32_0 = arith.constant 0 : i32
    %c0_i32_1 = arith.constant 0 : i32
    return %arg0, %c0_i32, %c0_i32_0 : i32, i32, i32
  }
  func.func @transform_1(%arg0: i32) -> (i32, i32, i32) {
    %c0_i32 = arith.constant 0 : i32
    %c0_i32_0 = arith.constant 0 : i32
    %c0_i32_1 = arith.constant 0 : i32
    %c0_i32_2 = arith.constant 0 : i32
    return %c0_i32, %c0_i32_0, %c0_i32_1 : i32, i32, i32
  }
  func.func @transform_2(%arg0: i32) -> (i32, i32) {
    %c0_i32 = arith.constant 0 : i32
    %c0_i32_0 = arith.constant 0 : i32
    %c0_i32_1 = arith.constant 0 : i32
    return %c0_i32, %c0_i32_0 : i32, i32
  }
  func.func @transform_3(%arg0: i32) -> (i32, i32) {
    %c0_i32 = arith.constant 0 : i32
    %c0_i32_0 = arith.constant 0 : i32
    %c0_i32_1 = arith.constant 0 : i32
    return %c0_i32, %c0_i32_0 : i32, i32
  }
  func.func @transform_4(%arg0: i32) -> (i32, i32) {
    %c0_i32 = arith.constant 0 : i32
    %c0_i32_0 = arith.constant 0 : i32
    %c0_i32_1 = arith.constant 0 : i32
    return %c0_i32, %c0_i32_0 : i32, i32
  }
  func.func @transform_5(%arg0: i32) -> (i32, i32) {
    %c0_i32 = arith.constant 0 : i32
    %c0_i32_0 = arith.constant 0 : i32
    %c0_i32_1 = arith.constant 0 : i32
    return %c0_i32, %c0_i32_0 : i32, i32
  }
  func.func @transform_6(%arg0: i32) -> (i32, i32) {
    %c0_i32 = arith.constant 0 : i32
    %c0_i32_0 = arith.constant 0 : i32
    %c0_i32_1 = arith.constant 0 : i32
    return %c0_i32, %c0_i32_0 : i32, i32
  }
  func.func @transform_7(%arg0: i32) -> (i32, i32) {
    %c0_i32 = arith.constant 0 : i32
    %c0_i32_0 = arith.constant 0 : i32
    %c0_i32_1 = arith.constant 0 : i32
    return %c0_i32, %c0_i32_0 : i32, i32
  }
  func.func @transform_8(%arg0: i32) -> (i32, i32) {
    %c0_i32 = arith.constant 0 : i32
    %c0_i32_0 = arith.constant 0 : i32
    %c0_i32_1 = arith.constant 0 : i32
    return %c0_i32, %c0_i32_0 : i32, i32
  }
  func.func @transform_9(%arg0: i32) -> (i32, i32) {
    %c0_i32 = arith.constant 0 : i32
    %c0_i32_0 = arith.constant 0 : i32
    %c0_i32_1 = arith.constant 0 : i32
    return %c0_i32, %c0_i32_0 : i32, i32
  }
  func.func @transform_10(%arg0: i32) -> (i32, i32) {
    %c0_i32 = arith.constant 0 : i32
    %c0_i32_0 = arith.constant 0 : i32
    return %arg0, %c0_i32 : i32, i32
  }
}

</mosaic_0001>

<llo_original>
// kernel: discriminator_forward.1
$region0: #{discriminator_forward.1}
  #allocation0 [shape = 'u32[]', space=smem, size = 0x4, offset = 0x4, fixed_abs, tag = 'smem constant byte address 0x4 - core index']
  #allocation1 [shape = 'u32[72,128]{1,0:T(1,128)}', space=vmem, size = 0x9000, scoped, tag = 'internal scratch']
  %s0 = inlined_call_operand.vmem [shape: bf16[8,9,32], index: 0, kind: input, shape index: {}]
  %s1 = inlined_call_operand.vmem [shape: bf16[3,32,128], index: 1, kind: input, shape index: {}]
  %s2 = inlined_call_operand.vmem [shape: f32[1,128], index: 2, kind: input, shape index: {}]
  %s3 = inlined_call_operand.vmem [shape: f32[7,128], index: 3, kind: input, shape index: {}]
  %s4 = inlined_call_operand.vmem [shape: bf16[128,128], index: 4, kind: input, shape index: {}]
  %s5 = inlined_call_operand.vmem [shape: f32[1,128], index: 5, kind: input, shape index: {}]
  %s6 = inlined_call_operand.vmem [shape: bf16[128,128], index: 6, kind: input, shape index: {}]
  %s7 = inlined_call_operand.vmem [shape: f32[1,128], index: 7, kind: input, shape index: {}]
  %s8 = inlined_call_operand.vmem [shape: bf16[128,128], index: 8, kind: input, shape index: {}]
  %s9 = inlined_call_operand.vmem [shape: f32[1,128], index: 9, kind: input, shape index: {}]
  %s10 = inlined_call_operand.vmem [shape: f32[8,128], index: 10, kind: output, shape index: {}]
  %s11 = sld [smem:[#allocation0]]
  $region50: #{discriminator_forward.1} parent=0
    _
  %s13 = ssub.s32 1, %s11
  %s14 = scalar_select 0, %s13, %s11
  // Predicated region
  $region2: #{discriminator_forward.1} parent=0 // pred_check
    _
  $region3: #{discriminator_forward.1} parent=0 // pred_check_branch
    %16 = sbr.rel (0) target = $region5
  $region4: #{discriminator_forward.1} parent=0 // pred_region
    _
  $region5: #{discriminator_forward.1} parent=0 // pred_fallthru
    _
  // Predicated region
  $region6: #{discriminator_forward.1} parent=0 // pred_check
    _
  $region7: #{discriminator_forward.1} parent=0 // pred_check_branch
    %18 = sbr.rel (0) target = $region9
  $region8: #{discriminator_forward.1} parent=0 // pred_region
    _
  $region9: #{discriminator_forward.1} parent=0 // pred_fallthru
    _
  // Predicated region
  $region10: #{discriminator_forward.1} parent=0 // pred_check
    _
  $region11: #{discriminator_forward.1} parent=0 // pred_check_branch
    %20 = sbr.rel (0) target = $region13
  $region12: #{discriminator_forward.1} parent=0 // pred_region
    _
  $region13: #{discriminator_forward.1} parent=0 // pred_fallthru
    _
  // Predicated region
  $region14: #{discriminator_forward.1} parent=0 // pred_check
    _
  $region15: #{discriminator_forward.1} parent=0 // pred_check_branch
    %22 = sbr.rel (0) target = $region17
  $region16: #{discriminator_forward.1} parent=0 // pred_region
    _
  $region17: #{discriminator_forward.1} parent=0 // pred_fallthru
    _
  // Predicated region
  $region18: #{discriminator_forward.1} parent=0 // pred_check
    _
  $region19: #{discriminator_forward.1} parent=0 // pred_check_branch
    %24 = sbr.rel (0) target = $region21
  $region20: #{discriminator_forward.1} parent=0 // pred_region
    _
  $region21: #{discriminator_forward.1} parent=0 // pred_fallthru
    _
  // Predicated region
  $region22: #{discriminator_forward.1} parent=0 // pred_check
    _
  $region23: #{discriminator_forward.1} parent=0 // pred_check_branch
    %26 = sbr.rel (0) target = $region25
  $region24: #{discriminator_forward.1} parent=0 // pred_region
    _
  $region25: #{discriminator_forward.1} parent=0 // pred_fallthru
    _
  // Predicated region
  $region26: #{discriminator_forward.1} parent=0 // pred_check
    _
  $region27: #{discriminator_forward.1} parent=0 // pred_check_branch
    %28 = sbr.rel (0) target = $region29
  $region28: #{discriminator_forward.1} parent=0 // pred_region
    _
  $region29: #{discriminator_forward.1} parent=0 // pred_fallthru
    _
  // Predicated region
  $region30: #{discriminator_forward.1} parent=0 // pred_check
    _
  $region31: #{discriminator_forward.1} parent=0 // pred_check_branch
    %30 = sbr.rel (0) target = $region33
  $region32: #{discriminator_forward.1} parent=0 // pred_region
    _
  $region33: #{discriminator_forward.1} parent=0 // pred_fallthru
    _
  // Predicated region
  $region34: #{discriminator_forward.1} parent=0 // pred_check
    _
  $region35: #{discriminator_forward.1} parent=0 // pred_check_branch
    %32 = sbr.rel (0) target = $region37
  $region36: #{discriminator_forward.1} parent=0 // pred_region
    _
  $region37: #{discriminator_forward.1} parent=0 // pred_fallthru
    _
  // Predicated region
  $region38: #{discriminator_forward.1} parent=0 // pred_check
    _
  $region39: #{discriminator_forward.1} parent=0 // pred_check_branch
    %34 = sbr.rel (0) target = $region41
  $region40: #{discriminator_forward.1} parent=0 // pred_region
    _
  $region41: #{discriminator_forward.1} parent=0 // pred_fallthru
    _
  %v36 = vld [vmem:[%s0] sm:$0xf]
  %v37 = vld [vmem:[%s0 + $0x4] sm:$0x1]
  %v38 = vld [vmem:[%s0 + $0x8] sm:$0xf]
  %v39 = vld [vmem:[%s0 + $0xc] sm:$0x1]
  %v40 = vld [vmem:[%s0 + $0x10] sm:$0xf]
  %v41 = vld [vmem:[%s0 + $0x14] sm:$0x1]
  %v42 = vld [vmem:[%s0 + $0x18] sm:$0xf]
  %v43 = vld [vmem:[%s0 + $0x1c] sm:$0x1]
  %v44 = vld [vmem:[%s0 + $0x20] sm:$0xf]
  %v45 = vld [vmem:[%s0 + $0x24] sm:$0x1]
  %v46 = vld [vmem:[%s0 + $0x28] sm:$0xf]
  %v47 = vld [vmem:[%s0 + $0x2c] sm:$0x1]
  %v48 = vld [vmem:[%s0 + $0x30] sm:$0xf]
  %v49 = vld [vmem:[%s0 + $0x34] sm:$0x1]
  %v50 = vld [vmem:[%s0 + $0x38] sm:$0xf]
  %v51 = vld [vmem:[%s0 + $0x3c] sm:$0x1]
  %v52 = vld [vmem:[%s1] sm:$0xf]
  %v53 = vld [vmem:[%s1 + $0x4] sm:$0xf]
  %v54 = vld [vmem:[%s1 + $0x8] sm:$0xf]
  %v55 = vld [vmem:[%s1 + $0xc] sm:$0xf]
  %s56 = scalar_lea.vmem %s1, 16
  %v57 = vld [vmem:[%s56] sm:$0xf]
  %v58 = vld [vmem:[%s56 + $0x4] sm:$0xf]
  %v59 = vld [vmem:[%s56 + $0x8] sm:$0xf]
  %v60 = vld [vmem:[%s56 + $0xc] sm:$0xf]
  %v69 = vrot.slane %v36, 3
  %v70 = vrot.slane %v38, 3
  %v71 = vrot.slane %v40, 3
  %v72 = vrot.slane %v42, 3
  %v73 = vrot.slane %v44, 3
  %v74 = vrot.slane %v46, 3
  %v75 = vrot.slane %v48, 3
  %v76 = vrot.slane %v50, 3
  %vm77 = vcmask 1040384
  %v80 = vsel %vm77, %v36, %v69
  %vm82 = vcmask 1041409
  %v83 = vsel %vm82, %v36, %v69
  %v85 = vrot.slane %v83, 1
  %vm86 = vcmask 1042434
  %v87 = vsel %vm86, %v36, %v69
  %v89 = vrot.slane %v87, 2
  %vm90 = vcmask 1043459
  %v91 = vsel %vm90, %v36, %v69
  %v93 = vrot.slane %v91, 3
  %v96 = vsel %vm77, %v38, %v70
  %v98 = vsel %vm82, %v38, %v70
  %v100 = vrot.slane %v98, 1
  %v101 = vsel %vm86, %v38, %v70
  %v103 = vrot.slane %v101, 2
  %v104 = vsel %vm90, %v38, %v70
  %v106 = vrot.slane %v104, 3
  %v109 = vsel %vm77, %v40, %v71
  %v111 = vsel %vm82, %v40, %v71
  %v113 = vrot.slane %v111, 1
  %v114 = vsel %vm86, %v40, %v71
  %v116 = vrot.slane %v114, 2
  %v117 = vsel %vm90, %v40, %v71
  %v119 = vrot.slane %v117, 3
  %v122 = vsel %vm77, %v42, %v72
  %v124 = vsel %vm82, %v42, %v72
  %v126 = vrot.slane %v124, 1
  %v127 = vsel %vm86, %v42, %v72
  %v129 = vrot.slane %v127, 2
  %v130 = vsel %vm90, %v42, %v72
  %v132 = vrot.slane %v130, 3
  %v135 = vsel %vm77, %v44, %v73
  %v137 = vsel %vm82, %v44, %v73
  %v139 = vrot.slane %v137, 1
  %v140 = vsel %vm86, %v44, %v73
  %v142 = vrot.slane %v140, 2
  %v143 = vsel %vm90, %v44, %v73
  %v145 = vrot.slane %v143, 3
  %v148 = vsel %vm77, %v46, %v74
  %v150 = vsel %vm82, %v46, %v74
  %v152 = vrot.slane %v150, 1
  %v153 = vsel %vm86, %v46, %v74
  %v155 = vrot.slane %v153, 2
  %v156 = vsel %vm90, %v46, %v74
  %v158 = vrot.slane %v156, 3
  %v161 = vsel %vm77, %v48, %v75
  %v163 = vsel %vm82, %v48, %v75
  %v165 = vrot.slane %v163, 1
  %v166 = vsel %vm86, %v48, %v75
  %v168 = vrot.slane %v166, 2
  %v169 = vsel %vm90, %v48, %v75
  %v171 = vrot.slane %v169, 3
  %v174 = vsel %vm77, %v50, %v76
  %v176 = vsel %vm82, %v50, %v76
  %v178 = vrot.slane %v176, 1
  %v179 = vsel %vm86, %v50, %v76
  %v181 = vrot.slane %v179, 2
  %v182 = vsel %vm90, %v50, %v76
  %v184 = vrot.slane %v182, 3
  %v185 = vunpack.i.h.s16 %v80
  %v186 = vunpack.i.l.s16 %v85
  %v187 = vunpack.i.h.s16 %v85
  %v188 = vunpack.i.l.s16 %v89
  %v189 = vunpack.i.h.s16 %v89
  %v190 = vunpack.i.l.s16 %v93
  %v191 = vunpack.i.h.s16 %v93
  %v192 = vunpack.i.h.s16 %v96
  %v193 = vunpack.i.l.s16 %v100
  %v194 = vunpack.i.h.s16 %v100
  %v195 = vunpack.i.l.s16 %v103
  %v196 = vunpack.i.h.s16 %v103
  %v197 = vunpack.i.l.s16 %v106
  %v198 = vunpack.i.h.s16 %v106
  %v199 = vunpack.i.h.s16 %v109
  %v200 = vunpack.i.l.s16 %v113
  %v201 = vunpack.i.h.s16 %v113
  %v202 = vunpack.i.l.s16 %v116
  %v203 = vunpack.i.h.s16 %v116
  %v204 = vunpack.i.l.s16 %v119
  %v205 = vunpack.i.h.s16 %v119
  %v206 = vunpack.i.h.s16 %v122
  %v207 = vunpack.i.l.s16 %v126
  %v208 = vunpack.i.h.s16 %v126
  %v209 = vunpack.i.l.s16 %v129
  %v210 = vunpack.i.h.s16 %v129
  %v211 = vunpack.i.l.s16 %v132
  %v212 = vunpack.i.h.s16 %v132
  %v213 = vunpack.i.h.s16 %v135
  %v214 = vunpack.i.l.s16 %v139
  %v215 = vunpack.i.h.s16 %v139
  %v216 = vunpack.i.l.s16 %v142
  %v217 = vunpack.i.h.s16 %v142
  %v218 = vunpack.i.l.s16 %v145
  %v219 = vunpack.i.h.s16 %v145
  %v220 = vunpack.i.h.s16 %v148
  %v221 = vunpack.i.l.s16 %v152
  %v222 = vunpack.i.h.s16 %v152
  %v223 = vunpack.i.l.s16 %v155
  %v224 = vunpack.i.h.s16 %v155
  %v225 = vunpack.i.l.s16 %v158
  %v226 = vunpack.i.h.s16 %v158
  %v227 = vunpack.i.h.s16 %v161
  %v228 = vunpack.i.l.s16 %v165
  %v229 = vunpack.i.h.s16 %v165
  %v230 = vunpack.i.l.s16 %v168
  %v231 = vunpack.i.h.s16 %v168
  %v232 = vunpack.i.l.s16 %v171
  %v233 = vunpack.i.h.s16 %v171
  %v234 = vunpack.i.h.s16 %v174
  %v235 = vunpack.i.l.s16 %v178
  %v236 = vunpack.i.h.s16 %v178
  %v237 = vunpack.i.l.s16 %v181
  %v238 = vunpack.i.h.s16 %v181
  %v239 = vunpack.i.l.s16 %v184
  %v240 = vunpack.i.h.s16 %v184
  %v241 = vpack.i.b16 %v186, %v185
  %v242 = vpack.i.b16 %v188, %v187
  %v243 = vpack.i.b16 %v190, %v189
  %v244 = vpack.i.b16 %v192, %v191
  %v245 = vpack.i.b16 %v194, %v193
  %v246 = vpack.i.b16 %v196, %v195
  %v247 = vpack.i.b16 %v198, %v197
  %v248 = vpack.i.b16 %v200, %v199
  %v249 = vpack.i.b16 %v202, %v201
  %v250 = vpack.i.b16 %v204, %v203
  %v251 = vpack.i.b16 %v206, %v205
  %v252 = vpack.i.b16 %v208, %v207
  %v253 = vpack.i.b16 %v210, %v209
  %v254 = vpack.i.b16 %v212, %v211
  %v255 = vpack.i.b16 %v214, %v213
  %v256 = vpack.i.b16 %v216, %v215
  %v257 = vpack.i.b16 %v218, %v217
  %v258 = vpack.i.b16 %v220, %v219
  %v259 = vpack.i.b16 %v222, %v221
  %v260 = vpack.i.b16 %v224, %v223
  %v261 = vpack.i.b16 %v226, %v225
  %v262 = vpack.i.b16 %v228, %v227
  %v263 = vpack.i.b16 %v230, %v229
  %v264 = vpack.i.b16 %v232, %v231
  %v265 = vpack.i.b16 %v234, %v233
  %v266 = vpack.i.b16 %v236, %v235
  %v267 = vpack.i.b16 %v238, %v237
  %v268 = vpack.i.b16 %v240, %v239
  %270 = vst [vmem:[#allocation1] ss:$9 sm:$0xff] %v241
  %s272 = scalar_lea.vmem [#allocation1], 1
  %273 = vst [vmem:[%s272] ss:$9 sm:$0xff] %v242
  %s275 = scalar_lea.vmem [#allocation1], 2
  %276 = vst [vmem:[%s275] ss:$9 sm:$0xff] %v243
  %s278 = scalar_lea.vmem [#allocation1], 3
  %279 = vst [vmem:[%s278] ss:$9 sm:$0xff] %v244
  %s281 = scalar_lea.vmem [#allocation1], 4
  %282 = vst [vmem:[%s281] ss:$9 sm:$0xff] %v245
  %s284 = scalar_lea.vmem [#allocation1], 5
  %285 = vst [vmem:[%s284] ss:$9 sm:$0xff] %v246
  %s287 = scalar_lea.vmem [#allocation1], 6
  %288 = vst [vmem:[%s287] ss:$9 sm:$0xff] %v247
  %s290 = scalar_lea.vmem [#allocation1], 7
  %291 = vst [vmem:[%s290] ss:$9 sm:$0xff] %v248
  %v292 = vld [vmem:[#allocation1] sm:$0xff]
  %294 = vst [vmem:[#allocation1] ss:$9 sm:$0xff] %v249
  %296 = vst [vmem:[%s272] ss:$9 sm:$0xff] %v250
  %298 = vst [vmem:[%s275] ss:$9 sm:$0xff] %v251
  %300 = vst [vmem:[%s278] ss:$9 sm:$0xff] %v252
  %302 = vst [vmem:[%s281] ss:$9 sm:$0xff] %v253
  %304 = vst [vmem:[%s284] ss:$9 sm:$0xff] %v254
  %306 = vst [vmem:[%s287] ss:$9 sm:$0xff] %v255
  %308 = vst [vmem:[%s290] ss:$9 sm:$0xff] %v256
  %v309 = vld [vmem:[#allocation1] sm:$0xff]
  %311 = vst [vmem:[#allocation1] ss:$9 sm:$0xff] %v257
  %313 = vst [vmem:[%s272] ss:$9 sm:$0xff] %v258
  %315 = vst [vmem:[%s275] ss:$9 sm:$0xff] %v259
  %317 = vst [vmem:[%s278] ss:$9 sm:$0xff] %v260
  %319 = vst [vmem:[%s281] ss:$9 sm:$0xff] %v261
  %321 = vst [vmem:[%s284] ss:$9 sm:$0xff] %v262
  %323 = vst [vmem:[%s287] ss:$9 sm:$0xff] %v263
  %325 = vst [vmem:[%s290] ss:$9 sm:$0xff] %v264
  %v326 = vld [vmem:[#allocation1] sm:$0xff]
  %328 = vst [vmem:[#allocation1] ss:$9 sm:$0xff] %v265
  %330 = vst [vmem:[%s272] ss:$9 sm:$0xff] %v266
  %332 = vst [vmem:[%s275] ss:$9 sm:$0xff] %v267
  %334 = vst [vmem:[%s278] ss:$9 sm:$0xff] %v268
  %v335 = vld [vmem:[#allocation1] sm:$0xff]
  %v340 = vunpack.c.l.b16 %v57
  %v341 = vunpack.c.l.b16 %v58
  %v342 = vunpack.c.l.b16 %v59
  %v343 = vunpack.c.l.b16 %v60
  %v344 = vpack.c.b16 %v341, %v340
  %v345 = vpack.c.b16 %v343, %v342
  %vm348 = vcmask 261120
  %v349 = vsel %vm348, %v292, 0
  %v351 = vsel %vm348, %v309, 0
  %v353 = vsel %vm348, %v326, 0
  %v355 = vsel %vm348, %v335, 0
  %357 = vmatpush.bf16.msra.mxu0 0
  %358 = vmatpush.bf16.msra.mxu0 0
  %359 = vmatpush.bf16.msra.mxu0 0
  %360 = vmatpush.bf16.msra.mxu0 0
  %361 = vmatpush.bf16.msra.mxu0 0
  %362 = vmatpush.bf16.msra.mxu0 0
  %363 = vmatpush.bf16.msra.mxu0 %v345
  %364 = vmatpush.bf16.msra.mxu0 %v344
  %365 = vmatmul.bf16.gmra.mxu0 %v349
  %v366 = vpop.f32.mrf.mxu0
  %v367 = vadd.f32 0.0, %v366
  %v368 = vpop.f32.mrf.mxu0
  %v369 = vadd.f32 0.0, %v368
  %370 = vmatmul.bf16.gmra.mxu0 %v351
  %v371 = vpop.f32.mrf.mxu0
  %v372 = vadd.f32 0.0, %v371
  %v373 = vpop.f32.mrf.mxu0
  %v374 = vadd.f32 0.0, %v373
  %375 = vmatmul.bf16.gmra.mxu0 %v353
  %v376 = vpop.f32.mrf.mxu0
  %v377 = vadd.f32 0.0, %v376
  %v378 = vpop.f32.mrf.mxu0
  %v379 = vadd.f32 0.0, %v378
  %380 = vmatmul.bf16.gmra.mxu0 %v355
  %v381 = vpop.f32.mrf.mxu0
  %v382 = vadd.f32 0.0, %v381
  %v383 = vpop.f32.mrf.mxu0
  %384 = vdwg.mxu0
  %v385 = vunpack.i.l.s16 %v80
  %v386 = vunpack.i.l.s16 %v96
  %v387 = vunpack.i.l.s16 %v109
  %v388 = vunpack.i.l.s16 %v122
  %v389 = vunpack.i.l.s16 %v135
  %v390 = vunpack.i.l.s16 %v148
  %v391 = vunpack.i.l.s16 %v161
  %v392 = vunpack.i.l.s16 %v174
  %v393 = vpack.i.b16 %v185, %v385
  %v394 = vpack.i.b16 %v187, %v186
  %v395 = vpack.i.b16 %v189, %v188
  %v396 = vpack.i.b16 %v386, %v190
  %v397 = vpack.i.b16 %v193, %v192
  %v398 = vpack.i.b16 %v195, %v194
  %v399 = vpack.i.b16 %v197, %v196
  %v400 = vpack.i.b16 %v199, %v387
  %v401 = vpack.i.b16 %v201, %v200
  %v402 = vpack.i.b16 %v203, %v202
  %v403 = vpack.i.b16 %v388, %v204
  %v404 = vpack.i.b16 %v207, %v206
  %v405 = vpack.i.b16 %v209, %v208
  %v406 = vpack.i.b16 %v211, %v210
  %v407 = vpack.i.b16 %v213, %v389
  %v408 = vpack.i.b16 %v215, %v214
  %v409 = vpack.i.b16 %v217, %v216
  %v410 = vpack.i.b16 %v390, %v218
  %v411 = vpack.i.b16 %v221, %v220
  %v412 = vpack.i.b16 %v223, %v222
  %v413 = vpack.i.b16 %v225, %v224
  %v414 = vpack.i.b16 %v227, %v391
  %v415 = vpack.i.b16 %v229, %v228
  %v416 = vpack.i.b16 %v231, %v230
  %v417 = vpack.i.b16 %v392, %v232
  %v418 = vpack.i.b16 %v235, %v234
  %v419 = vpack.i.b16 %v237, %v236
  %v420 = vpack.i.b16 %v239, %v238
  %422 = vst [vmem:[#allocation1] ss:$9 sm:$0xff] %v393
  %s424 = scalar_lea.vmem [#allocation1], 1
  %425 = vst [vmem:[%s424] ss:$9 sm:$0xff] %v394
  %s427 = scalar_lea.vmem [#allocation1], 2
  %428 = vst [vmem:[%s427] ss:$9 sm:$0xff] %v395
  %s430 = scalar_lea.vmem [#allocation1], 3
  %431 = vst [vmem:[%s430] ss:$9 sm:$0xff] %v396
  %s433 = scalar_lea.vmem [#allocation1], 4
  %434 = vst [vmem:[%s433] ss:$9 sm:$0xff] %v397
  %s436 = scalar_lea.vmem [#allocation1], 5
  %437 = vst [vmem:[%s436] ss:$9 sm:$0xff] %v398
  %s439 = scalar_lea.vmem [#allocation1], 6
  %440 = vst [vmem:[%s439] ss:$9 sm:$0xff] %v399
  %s442 = scalar_lea.vmem [#allocation1], 7
  %443 = vst [vmem:[%s442] ss:$9 sm:$0xff] %v400
  %v444 = vld [vmem:[#allocation1] sm:$0xff]
  %446 = vst [vmem:[#allocation1] ss:$9 sm:$0xff] %v401
  %448 = vst [vmem:[%s424] ss:$9 sm:$0xff] %v402
  %450 = vst [vmem:[%s427] ss:$9 sm:$0xff] %v403
  %452 = vst [vmem:[%s430] ss:$9 sm:$0xff] %v404
  %454 = vst [vmem:[%s433] ss:$9 sm:$0xff] %v405
  %456 = vst [vmem:[%s436] ss:$9 sm:$0xff] %v406
  %458 = vst [vmem:[%s439] ss:$9 sm:$0xff] %v407
  %460 = vst [vmem:[%s442] ss:$9 sm:$0xff] %v408
  %v461 = vld [vmem:[#allocation1] sm:$0xff]
  %463 = vst [vmem:[#allocation1] ss:$9 sm:$0xff] %v409
  %465 = vst [vmem:[%s424] ss:$9 sm:$0xff] %v410
  %467 = vst [vmem:[%s427] ss:$9 sm:$0xff] %v411
  %469 = vst [vmem:[%s430] ss:$9 sm:$0xff] %v412
  %471 = vst [vmem:[%s433] ss:$9 sm:$0xff] %v413
  %473 = vst [vmem:[%s436] ss:$9 sm:$0xff] %v414
  %475 = vst [vmem:[%s439] ss:$9 sm:$0xff] %v415
  %477 = vst [vmem:[%s442] ss:$9 sm:$0xff] %v416
  %v478 = vld [vmem:[#allocation1] sm:$0xff]
  %480 = vst [vmem:[#allocation1] ss:$9 sm:$0xff] %v417
  %482 = vst [vmem:[%s424] ss:$9 sm:$0xff] %v418
  %484 = vst [vmem:[%s427] ss:$9 sm:$0xff] %v419
  %486 = vst [vmem:[%s430] ss:$9 sm:$0xff] %v420
  %v487 = vld [vmem:[#allocation1] sm:$0xff]
  %v492 = vunpack.c.l.b16 %v52
  %v493 = vunpack.c.l.b16 %v53
  %v494 = vunpack.c.l.b16 %v54
  %v495 = vunpack.c.l.b16 %v55
  %v496 = vpack.c.b16 %v493, %v492
  %v497 = vpack.c.b16 %v495, %v494
  %v500 = vsel %vm348, %v444, 0
  %v502 = vsel %vm348, %v461, 0
  %v504 = vsel %vm348, %v478, 0
  %v506 = vsel %vm348, %v487, 0
  %508 = vmatpush.bf16.msra.mxu0 0
  %509 = vmatpush.bf16.msra.mxu0 0
  %510 = vmatpush.bf16.msra.mxu0 0
  %511 = vmatpush.bf16.msra.mxu0 0
  %512 = vmatpush.bf16.msra.mxu0 0
  %513 = vmatpush.bf16.msra.mxu0 0
  %514 = vmatpush.bf16.msra.mxu0 %v497
  %515 = vmatpush.bf16.msra.mxu0 %v496
  %516 = vmatmul.bf16.gmra.mxu0 %v500
  %v517 = vpop.f32.mrf.mxu0
  %v518 = vadd.f32 %v367, %v517
  %v519 = vpop.f32.mrf.mxu0
  %v520 = vadd.f32 %v369, %v519
  %521 = vmatmul.bf16.gmra.mxu0 %v502
  %v522 = vpop.f32.mrf.mxu0
  %v523 = vadd.f32 %v372, %v522
  %v524 = vpop.f32.mrf.mxu0
  %v525 = vadd.f32 %v374, %v524
  %526 = vmatmul.bf16.gmra.mxu0 %v504
  %v527 = vpop.f32.mrf.mxu0
  %v528 = vadd.f32 %v377, %v527
  %v529 = vpop.f32.mrf.mxu0
  %v530 = vadd.f32 %v379, %v529
  %531 = vmatmul.bf16.gmra.mxu0 %v506
  %v532 = vpop.f32.mrf.mxu0
  %v533 = vadd.f32 %v382, %v532
  %v534 = vpop.f32.mrf.mxu0
  %535 = vdwg.mxu0
  %v543 = vrot.slane %v518, 1
  %v544 = vrot.slane %v518, 2
  %v545 = vrot.slane %v518, 3
  %v546 = vrot.slane %v518, 4
  %v547 = vrot.slane %v518, 5
  %v548 = vrot.slane %v518, 6
  %v549 = vrot.slane %v518, 7
  %v550 = vrot.slane %v520, 1
  %v551 = vrot.slane %v520, 2
  %v552 = vrot.slane %v520, 3
  %v553 = vrot.slane %v520, 4
  %v554 = vrot.slane %v520, 5
  %v555 = vrot.slane %v520, 6
  %v556 = vrot.slane %v520, 7
  %v557 = vrot.slane %v523, 1
  %v558 = vrot.slane %v523, 2
  %v559 = vrot.slane %v523, 3
  %v560 = vrot.slane %v523, 4
  %v561 = vrot.slane %v523, 5
  %v562 = vrot.slane %v523, 6
  %v563 = vrot.slane %v523, 7
  %v564 = vrot.slane %v525, 1
  %v565 = vrot.slane %v525, 2
  %v566 = vrot.slane %v525, 3
  %v567 = vrot.slane %v525, 4
  %v568 = vrot.slane %v525, 5
  %v569 = vrot.slane %v525, 6
  %v570 = vrot.slane %v525, 7
  %v571 = vrot.slane %v528, 1
  %v572 = vrot.slane %v528, 2
  %v573 = vrot.slane %v528, 3
  %v574 = vrot.slane %v528, 4
  %v575 = vrot.slane %v528, 5
  %v576 = vrot.slane %v528, 6
  %v577 = vrot.slane %v528, 7
  %v578 = vrot.slane %v530, 1
  %v579 = vrot.slane %v530, 2
  %v580 = vrot.slane %v530, 3
  %v581 = vrot.slane %v530, 4
  %v582 = vrot.slane %v530, 5
  %v583 = vrot.slane %v530, 6
  %v584 = vrot.slane %v530, 7
  %v585 = vrot.slane %v533, 1
  %v586 = vrot.slane %v533, 2
  %v587 = vrot.slane %v533, 3
  %v588 = vrot.slane %v533, 4
  %v589 = vrot.slane %v533, 5
  %v590 = vrot.slane %v533, 6
  %v591 = vrot.slane %v533, 7
  %s641 = scalar_lea.vmem %s1, 32
  %v642 = vld [vmem:[%s641] sm:$0xf]
  %v643 = vld [vmem:[%s641 + $0x4] sm:$0xf]
  %v644 = vld [vmem:[%s641 + $0x8] sm:$0xf]
  %v645 = vld [vmem:[%s641 + $0xc] sm:$0xf]
  %646 = vst [vmem:[#allocation1] sm:$0xff] %v36
  %648 = vst [vmem:[#allocation1 + $0x20] sm:$0xff] %v37
  %s649 = scalar_lea.vmem [#allocation1], 1
  %v650 = vld [vmem:[%s649] ss:$4 sm:$0xff]
  %s652 = scalar_lea.vmem [#allocation1], 2
  %v653 = vld [vmem:[%s652] ss:$4 sm:$0xff]
  %s655 = scalar_lea.vmem [#allocation1], 3
  %v656 = vld [vmem:[%s655] ss:$4 sm:$0xff]
  %s658 = scalar_lea.vmem [#allocation1], 32
  %v659 = vld [vmem:[%s658] ss:$4 sm:$0xff]
  %661 = vst [vmem:[#allocation1] sm:$0xff] %v38
  %663 = vst [vmem:[#allocation1 + $0x20] sm:$0xff] %v39
  %v664 = vld [vmem:[%s649] ss:$4 sm:$0xff]
  %v666 = vld [vmem:[%s652] ss:$4 sm:$0xff]
  %v668 = vld [vmem:[%s655] ss:$4 sm:$0xff]
  %v670 = vld [vmem:[%s658] ss:$4 sm:$0xff]
  %672 = vst [vmem:[#allocation1] sm:$0xff] %v40
  %674 = vst [vmem:[#allocation1 + $0x20] sm:$0xff] %v41
  %v675 = vld [vmem:[%s649] ss:$4 sm:$0xff]
  %v677 = vld [vmem:[%s652] ss:$4 sm:$0xff]
  %v679 = vld [vmem:[%s655] ss:$4 sm:$0xff]
  %v681 = vld [vmem:[%s658] ss:$4 sm:$0xff]
  %683 = vst [vmem:[#allocation1] sm:$0xff] %v42
  %685 = vst [vmem:[#allocation1 + $0x20] sm:$0xff] %v43
  %v686 = vld [vmem:[%s649] ss:$4 sm:$0xff]
  %v688 = vld [vmem:[%s652] ss:$4 sm:$0xff]
  %v690 = vld [vmem:[%s655] ss:$4 sm:$0xff]
  %v692 = vld [vmem:[%s658] ss:$4 sm:$0xff]
  %694 = vst [vmem:[#allocation1] sm:$0xff] %v44
  %696 = vst [vmem:[#allocation1 + $0x20] sm:$0xff] %v45
  %v697 = vld [vmem:[%s649] ss:$4 sm:$0xff]
  %v699 = vld [vmem:[%s652] ss:$4 sm:$0xff]
  %v701 = vld [vmem:[%s655] ss:$4 sm:$0xff]
  %v703 = vld [vmem:[%s658] ss:$4 sm:$0xff]
  %705 = vst [vmem:[#allocation1] sm:$0xff] %v46
  %707 = vst [vmem:[#allocation1 + $0x20] sm:$0xff] %v47
  %v708 = vld [vmem:[%s649] ss:$4 sm:$0xff]
  %v710 = vld [vmem:[%s652] ss:$4 sm:$0xff]
  %v712 = vld [vmem:[%s655] ss:$4 sm:$0xff]
  %v714 = vld [vmem:[%s658] ss:$4 sm:$0xff]
  %716 = vst [vmem:[#allocation1] sm:$0xff] %v48
  %718 = vst [vmem:[#allocation1 + $0x20] sm:$0xff] %v49
  %v719 = vld [vmem:[%s649] ss:$4 sm:$0xff]
  %v721 = vld [vmem:[%s652] ss:$4 sm:$0xff]
  %v723 = vld [vmem:[%s655] ss:$4 sm:$0xff]
  %v725 = vld [vmem:[%s658] ss:$4 sm:$0xff]
  %727 = vst [vmem:[#allocation1] sm:$0xff] %v50
  %729 = vst [vmem:[#allocation1 + $0x20] sm:$0xff] %v51
  %v730 = vld [vmem:[%s649] ss:$4 sm:$0xff]
  %v732 = vld [vmem:[%s652] ss:$4 sm:$0xff]
  %v734 = vld [vmem:[%s655] ss:$4 sm:$0xff]
  %v736 = vld [vmem:[%s658] ss:$4 sm:$0xff]
  %v738 = vunpack.i.l.s16 %v650
  %v739 = vunpack.i.h.s16 %v650
  %v740 = vunpack.i.l.s16 %v653
  %v741 = vunpack.i.h.s16 %v653
  %v742 = vunpack.i.l.s16 %v656
  %v743 = vunpack.i.h.s16 %v656
  %v744 = vunpack.i.l.s16 %v659
  %v745 = vunpack.i.l.s16 %v664
  %v746 = vunpack.i.h.s16 %v664
  %v747 = vunpack.i.l.s16 %v666
  %v748 = vunpack.i.h.s16 %v666
  %v749 = vunpack.i.l.s16 %v668
  %v750 = vunpack.i.h.s16 %v668
  %v751 = vunpack.i.l.s16 %v670
  %v752 = vunpack.i.l.s16 %v675
  %v753 = vunpack.i.h.s16 %v675
  %v754 = vunpack.i.l.s16 %v677
  %v755 = vunpack.i.h.s16 %v677
  %v756 = vunpack.i.l.s16 %v679
  %v757 = vunpack.i.h.s16 %v679
  %v758 = vunpack.i.l.s16 %v681
  %v759 = vunpack.i.l.s16 %v686
  %v760 = vunpack.i.h.s16 %v686
  %v761 = vunpack.i.l.s16 %v688
  %v762 = vunpack.i.h.s16 %v688
  %v763 = vunpack.i.l.s16 %v690
  %v764 = vunpack.i.h.s16 %v690
  %v765 = vunpack.i.l.s16 %v692
  %v766 = vunpack.i.l.s16 %v697
  %v767 = vunpack.i.h.s16 %v697
  %v768 = vunpack.i.l.s16 %v699
  %v769 = vunpack.i.h.s16 %v699
  %v770 = vunpack.i.l.s16 %v701
  %v771 = vunpack.i.h.s16 %v701
  %v772 = vunpack.i.l.s16 %v703
  %v773 = vunpack.i.l.s16 %v708
  %v774 = vunpack.i.h.s16 %v708
  %v775 = vunpack.i.l.s16 %v710
  %v776 = vunpack.i.h.s16 %v710
  %v777 = vunpack.i.l.s16 %v712
  %v778 = vunpack.i.h.s16 %v712
  %v779 = vunpack.i.l.s16 %v714
  %v780 = vunpack.i.l.s16 %v719
  %v781 = vunpack.i.h.s16 %v719
  %v782 = vunpack.i.l.s16 %v721
  %v783 = vunpack.i.h.s16 %v721
  %v784 = vunpack.i.l.s16 %v723
  %v785 = vunpack.i.h.s16 %v723
  %v786 = vunpack.i.l.s16 %v725
  %v787 = vunpack.i.l.s16 %v730
  %v788 = vunpack.i.h.s16 %v730
  %v789 = vunpack.i.l.s16 %v732
  %v790 = vunpack.i.h.s16 %v732
  %v791 = vunpack.i.l.s16 %v734
  %v792 = vunpack.i.h.s16 %v734
  %v793 = vunpack.i.l.s16 %v736
  %v794 = vpack.i.b16 %v739, %v738
  %v795 = vpack.i.b16 %v741, %v740
  %v796 = vpack.i.b16 %v743, %v742
  %v797 = vpack.i.b16 %v745, %v744
  %v798 = vpack.i.b16 %v747, %v746
  %v799 = vpack.i.b16 %v749, %v748
  %v800 = vpack.i.b16 %v751, %v750
  %v801 = vpack.i.b16 %v753, %v752
  %v802 = vpack.i.b16 %v755, %v754
  %v803 = vpack.i.b16 %v757, %v756
  %v804 = vpack.i.b16 %v759, %v758
  %v805 = vpack.i.b16 %v761, %v760
  %v806 = vpack.i.b16 %v763, %v762
  %v807 = vpack.i.b16 %v765, %v764
  %v808 = vpack.i.b16 %v767, %v766
  %v809 = vpack.i.b16 %v769, %v768
  %v810 = vpack.i.b16 %v771, %v770
  %v811 = vpack.i.b16 %v773, %v772
  %v812 = vpack.i.b16 %v775, %v774
  %v813 = vpack.i.b16 %v777, %v776
  %v814 = vpack.i.b16 %v779, %v778
  %v815 = vpack.i.b16 %v781, %v780
  %v816 = vpack.i.b16 %v783, %v782
  %v817 = vpack.i.b16 %v785, %v784
  %v818 = vpack.i.b16 %v787, %v786
  %v819 = vpack.i.b16 %v789, %v788
  %v820 = vpack.i.b16 %v791, %v790
  %v821 = vpack.i.b16 %v793, %v792
  %823 = vst [vmem:[#allocation1] ss:$9 sm:$0xff] %v794
  %s825 = scalar_lea.vmem [#allocation1], 1
  %826 = vst [vmem:[%s825] ss:$9 sm:$0xff] %v795
  %s828 = scalar_lea.vmem [#allocation1], 2
  %829 = vst [vmem:[%s828] ss:$9 sm:$0xff] %v796
  %s831 = scalar_lea.vmem [#allocation1], 3
  %832 = vst [vmem:[%s831] ss:$9 sm:$0xff] %v797
  %s834 = scalar_lea.vmem [#allocation1], 4
  %835 = vst [vmem:[%s834] ss:$9 sm:$0xff] %v798
  %s837 = scalar_lea.vmem [#allocation1], 5
  %838 = vst [vmem:[%s837] ss:$9 sm:$0xff] %v799
  %s840 = scalar_lea.vmem [#allocation1], 6
  %841 = vst [vmem:[%s840] ss:$9 sm:$0xff] %v800
  %s843 = scalar_lea.vmem [#allocation1], 7
  %844 = vst [vmem:[%s843] ss:$9 sm:$0xff] %v801
  %v845 = vld [vmem:[#allocation1] sm:$0xff]
  %847 = vst [vmem:[#allocation1] ss:$9 sm:$0xff] %v802
  %849 = vst [vmem:[%s825] ss:$9 sm:$0xff] %v803
  %851 = vst [vmem:[%s828] ss:$9 sm:$0xff] %v804
  %853 = vst [vmem:[%s831] ss:$9 sm:$0xff] %v805
  %855 = vst [vmem:[%s834] ss:$9 sm:$0xff] %v806
  %857 = vst [vmem:[%s837] ss:$9 sm:$0xff] %v807
  %859 = vst [vmem:[%s840] ss:$9 sm:$0xff] %v808
  %861 = vst [vmem:[%s843] ss:$9 sm:$0xff] %v809
  %v862 = vld [vmem:[#allocation1] sm:$0xff]
  %864 = vst [vmem:[#allocation1] ss:$9 sm:$0xff] %v810
  %866 = vst [vmem:[%s825] ss:$9 sm:$0xff] %v811
  %868 = vst [vmem:[%s828] ss:$9 sm:$0xff] %v812
  %870 = vst [vmem:[%s831] ss:$9 sm:$0xff] %v813
  %872 = vst [vmem:[%s834] ss:$9 sm:$0xff] %v814
  %874 = vst [vmem:[%s837] ss:$9 sm:$0xff] %v815
  %876 = vst [vmem:[%s840] ss:$9 sm:$0xff] %v816
  %878 = vst [vmem:[%s843] ss:$9 sm:$0xff] %v817
  %v879 = vld [vmem:[#allocation1] sm:$0xff]
  %881 = vst [vmem:[#allocation1] ss:$9 sm:$0xff] %v818
  %883 = vst [vmem:[%s825] ss:$9 sm:$0xff] %v819
  %885 = vst [vmem:[%s828] ss:$9 sm:$0xff] %v820
  %887 = vst [vmem:[%s831] ss:$9 sm:$0xff] %v821
  %v888 = vld [vmem:[#allocation1] sm:$0xff]
  %v893 = vunpack.c.l.b16 %v642
  %v894 = vunpack.c.l.b16 %v643
  %v895 = vunpack.c.l.b16 %v644
  %v896 = vunpack.c.l.b16 %v645
  %v897 = vpack.c.b16 %v894, %v893
  %v898 = vpack.c.b16 %v896, %v895
  %v901 = vsel %vm348, %v845, 0
  %v903 = vsel %vm348, %v862, 0
  %v905 = vsel %vm348, %v879, 0
  %v907 = vsel %vm348, %v888, 0
  %909 = vmatpush.bf16.msra.mxu0 0
  %910 = vmatpush.bf16.msra.mxu0 0
  %911 = vmatpush.bf16.msra.mxu0 0
  %912 = vmatpush.bf16.msra.mxu0 0
  %913 = vmatpush.bf16.msra.mxu0 0
  %914 = vmatpush.bf16.msra.mxu0 0
  %915 = vmatpush.bf16.msra.mxu0 %v898
  %916 = vmatpush.bf16.msra.mxu0 %v897
  %917 = vmatmul.bf16.gmra.mxu0 %v901
  %v918 = vpop.f32.mrf.mxu0
  %v919 = vadd.f32 0.0, %v918
  %v920 = vpop.f32.mrf.mxu0
  %v921 = vadd.f32 0.0, %v920
  %922 = vmatmul.bf16.gmra.mxu0 %v903
  %v923 = vpop.f32.mrf.mxu0
  %v924 = vadd.f32 0.0, %v923
  %v925 = vpop.f32.mrf.mxu0
  %v926 = vadd.f32 0.0, %v925
  %927 = vmatmul.bf16.gmra.mxu0 %v905
  %v928 = vpop.f32.mrf.mxu0
  %v929 = vadd.f32 0.0, %v928
  %v930 = vpop.f32.mrf.mxu0
  %v931 = vadd.f32 0.0, %v930
  %932 = vmatmul.bf16.gmra.mxu0 %v907
  %v933 = vpop.f32.mrf.mxu0
  %v934 = vadd.f32 0.0, %v933
  %v935 = vpop.f32.mrf.mxu0
  %936 = vdwg.mxu0
  %v944 = vrot.slane %v919, 1
  %v945 = vrot.slane %v919, 2
  %v946 = vrot.slane %v919, 3
  %v947 = vrot.slane %v919, 4
  %v948 = vrot.slane %v919, 5
  %v949 = vrot.slane %v919, 6
  %v950 = vrot.slane %v919, 7
  %v951 = vrot.slane %v921, 1
  %v952 = vrot.slane %v921, 2
  %v953 = vrot.slane %v921, 3
  %v954 = vrot.slane %v921, 4
  %v955 = vrot.slane %v921, 5
  %v956 = vrot.slane %v921, 6
  %v957 = vrot.slane %v921, 7
  %v958 = vrot.slane %v924, 1
  %v959 = vrot.slane %v924, 2
  %v960 = vrot.slane %v924, 3
  %v961 = vrot.slane %v924, 4
  %v962 = vrot.slane %v924, 5
  %v963 = vrot.slane %v924, 6
  %v964 = vrot.slane %v924, 7
  %v965 = vrot.slane %v926, 1
  %v966 = vrot.slane %v926, 2
  %v967 = vrot.slane %v926, 3
  %v968 = vrot.slane %v926, 4
  %v969 = vrot.slane %v926, 5
  %v970 = vrot.slane %v926, 6
  %v971 = vrot.slane %v926, 7
  %v972 = vrot.slane %v929, 1
  %v973 = vrot.slane %v929, 2
  %v974 = vrot.slane %v929, 3
  %v975 = vrot.slane %v929, 4
  %v976 = vrot.slane %v929, 5
  %v977 = vrot.slane %v929, 6
  %v978 = vrot.slane %v929, 7
  %v979 = vrot.slane %v931, 1
  %v980 = vrot.slane %v931, 2
  %v981 = vrot.slane %v931, 3
  %v982 = vrot.slane %v931, 4
  %v983 = vrot.slane %v931, 5
  %v984 = vrot.slane %v931, 6
  %v985 = vrot.slane %v931, 7
  %v986 = vrot.slane %v934, 1
  %v987 = vrot.slane %v934, 2
  %v988 = vrot.slane %v934, 3
  %v989 = vrot.slane %v934, 4
  %v990 = vrot.slane %v934, 5
  %v991 = vrot.slane %v934, 6
  %v992 = vrot.slane %v934, 7
  %v1042 = vadd.f32 %v518, %v919
  %v1043 = vadd.f32 %v543, %v944
  %v1044 = vadd.f32 %v544, %v945
  %v1045 = vadd.f32 %v545, %v946
  %v1046 = vadd.f32 %v546, %v947
  %v1047 = vadd.f32 %v547, %v948
  %v1048 = vadd.f32 %v548, %v949
  %v1049 = vadd.f32 %v549, %v950
  %v1050 = vadd.f32 %v520, %v921
  %v1051 = vadd.f32 %v550, %v951
  %v1052 = vadd.f32 %v551, %v952
  %v1053 = vadd.f32 %v552, %v953
  %v1054 = vadd.f32 %v553, %v954
  %v1055 = vadd.f32 %v554, %v955
  %v1056 = vadd.f32 %v555, %v956
  %v1057 = vadd.f32 %v556, %v957
  %v1058 = vadd.f32 %v523, %v924
  %v1059 = vadd.f32 %v557, %v958
  %v1060 = vadd.f32 %v558, %v959
  %v1061 = vadd.f32 %v559, %v960
  %v1062 = vadd.f32 %v560, %v961
  %v1063 = vadd.f32 %v561, %v962
  %v1064 = vadd.f32 %v562, %v963
  %v1065 = vadd.f32 %v563, %v964
  %v1066 = vadd.f32 %v525, %v926
  %v1067 = vadd.f32 %v564, %v965
  %v1068 = vadd.f32 %v565, %v966
  %v1069 = vadd.f32 %v566, %v967
  %v1070 = vadd.f32 %v567, %v968
  %v1071 = vadd.f32 %v568, %v969
  %v1072 = vadd.f32 %v569, %v970
  %v1073 = vadd.f32 %v570, %v971
  %v1074 = vadd.f32 %v528, %v929
  %v1075 = vadd.f32 %v571, %v972
  %v1076 = vadd.f32 %v572, %v973
  %v1077 = vadd.f32 %v573, %v974
  %v1078 = vadd.f32 %v574, %v975
  %v1079 = vadd.f32 %v575, %v976
  %v1080 = vadd.f32 %v576, %v977
  %v1081 = vadd.f32 %v577, %v978
  %v1082 = vadd.f32 %v530, %v931
  %v1083 = vadd.f32 %v578, %v979
  %v1084 = vadd.f32 %v579, %v980
  %v1085 = vadd.f32 %v580, %v981
  %v1086 = vadd.f32 %v581, %v982
  %v1087 = vadd.f32 %v582, %v983
  %v1088 = vadd.f32 %v583, %v984
  %v1089 = vadd.f32 %v584, %v985
  %v1090 = vadd.f32 %v533, %v934
  %v1091 = vadd.f32 %v585, %v986
  %v1092 = vadd.f32 %v586, %v987
  %v1093 = vadd.f32 %v587, %v988
  %v1094 = vadd.f32 %v588, %v989
  %v1095 = vadd.f32 %v589, %v990
  %v1096 = vadd.f32 %v590, %v991
  %v1097 = vadd.f32 %v591, %v992
  %v1098 = vld [vmem:[%s2] sm:$0x1]
  %v1100 = vperm.slane %v1098, 0
  %v1102 = vrot.slane %v1100, 1
  %v1103 = vrot.slane %v1100, 2
  %v1104 = vrot.slane %v1100, 3
  %v1105 = vrot.slane %v1100, 4
  %v1106 = vrot.slane %v1100, 5
  %v1107 = vrot.slane %v1100, 6
  %v1114 = vadd.f32 %v1042, %v1100
  %v1115 = vadd.f32 %v1043, %v1102
  %v1116 = vadd.f32 %v1044, %v1103
  %v1117 = vadd.f32 %v1045, %v1104
  %v1118 = vadd.f32 %v1046, %v1105
  %v1119 = vadd.f32 %v1047, %v1106
  %v1120 = vadd.f32 %v1048, %v1107
  %v1121 = vadd.f32 %v1049, %v1100
  %v1122 = vadd.f32 %v1050, %v1102
  %v1123 = vadd.f32 %v1051, %v1103
  %v1124 = vadd.f32 %v1052, %v1104
  %v1125 = vadd.f32 %v1053, %v1105
  %v1126 = vadd.f32 %v1054, %v1106
  %v1127 = vadd.f32 %v1055, %v1107
  %v1128 = vadd.f32 %v1056, %v1100
  %v1129 = vadd.f32 %v1057, %v1102
  %v1130 = vadd.f32 %v1058, %v1103
  %v1131 = vadd.f32 %v1059, %v1104
  %v1132 = vadd.f32 %v1060, %v1105
  %v1133 = vadd.f32 %v1061, %v1106
  %v1134 = vadd.f32 %v1062, %v1107
  %v1135 = vadd.f32 %v1063, %v1100
  %v1136 = vadd.f32 %v1064, %v1102
  %v1137 = vadd.f32 %v1065, %v1103
  %v1138 = vadd.f32 %v1066, %v1104
  %v1139 = vadd.f32 %v1067, %v1105
  %v1140 = vadd.f32 %v1068, %v1106
  %v1141 = vadd.f32 %v1069, %v1107
  %v1142 = vadd.f32 %v1070, %v1100
  %v1143 = vadd.f32 %v1071, %v1102
  %v1144 = vadd.f32 %v1072, %v1103
  %v1145 = vadd.f32 %v1073, %v1104
  %v1146 = vadd.f32 %v1074, %v1105
  %v1147 = vadd.f32 %v1075, %v1106
  %v1148 = vadd.f32 %v1076, %v1107
  %v1149 = vadd.f32 %v1077, %v1100
  %v1150 = vadd.f32 %v1078, %v1102
  %v1151 = vadd.f32 %v1079, %v1103
  %v1152 = vadd.f32 %v1080, %v1104
  %v1153 = vadd.f32 %v1081, %v1105
  %v1154 = vadd.f32 %v1082, %v1106
  %v1155 = vadd.f32 %v1083, %v1107
  %v1156 = vadd.f32 %v1084, %v1100
  %v1157 = vadd.f32 %v1085, %v1102
  %v1158 = vadd.f32 %v1086, %v1103
  %v1159 = vadd.f32 %v1087, %v1104
  %v1160 = vadd.f32 %v1088, %v1105
  %v1161 = vadd.f32 %v1089, %v1106
  %v1162 = vadd.f32 %v1090, %v1107
  %v1163 = vadd.f32 %v1091, %v1100
  %v1164 = vadd.f32 %v1092, %v1102
  %v1165 = vadd.f32 %v1093, %v1103
  %v1166 = vadd.f32 %v1094, %v1104
  %v1167 = vadd.f32 %v1095, %v1105
  %v1168 = vadd.f32 %v1096, %v1106
  %v1169 = vadd.f32 %v1097, %v1107
  %v1170 = vmax.f32 %v1114, 0.0
  %v1171 = vmax.f32 %v1115, 0.0
  %v1172 = vmax.f32 %v1116, 0.0
  %v1173 = vmax.f32 %v1117, 0.0
  %v1174 = vmax.f32 %v1118, 0.0
  %v1175 = vmax.f32 %v1119, 0.0
  %v1176 = vmax.f32 %v1120, 0.0
  %v1177 = vmax.f32 %v1121, 0.0
  %v1178 = vmax.f32 %v1122, 0.0
  %v1179 = vmax.f32 %v1123, 0.0
  %v1180 = vmax.f32 %v1124, 0.0
  %v1181 = vmax.f32 %v1125, 0.0
  %v1182 = vmax.f32 %v1126, 0.0
  %v1183 = vmax.f32 %v1127, 0.0
  %v1184 = vmax.f32 %v1128, 0.0
  %v1185 = vmax.f32 %v1129, 0.0
  %v1186 = vmax.f32 %v1130, 0.0
  %v1187 = vmax.f32 %v1131, 0.0
  %v1188 = vmax.f32 %v1132, 0.0
  %v1189 = vmax.f32 %v1133, 0.0
  %v1190 = vmax.f32 %v1134, 0.0
  %v1191 = vmax.f32 %v1135, 0.0
  %v1192 = vmax.f32 %v1136, 0.0
  %v1193 = vmax.f32 %v1137, 0.0
  %v1194 = vmax.f32 %v1138, 0.0
  %v1195 = vmax.f32 %v1139, 0.0
  %v1196 = vmax.f32 %v1140, 0.0
  %v1197 = vmax.f32 %v1141, 0.0
  %v1198 = vmax.f32 %v1142, 0.0
  %v1199 = vmax.f32 %v1143, 0.0
  %v1200 = vmax.f32 %v1144, 0.0
  %v1201 = vmax.f32 %v1145, 0.0
  %v1202 = vmax.f32 %v1146, 0.0
  %v1203 = vmax.f32 %v1147, 0.0
  %v1204 = vmax.f32 %v1148, 0.0
  %v1205 = vmax.f32 %v1149, 0.0
  %v1206 = vmax.f32 %v1150, 0.0
  %v1207 = vmax.f32 %v1151, 0.0
  %v1208 = vmax.f32 %v1152, 0.0
  %v1209 = vmax.f32 %v1153, 0.0
  %v1210 = vmax.f32 %v1154, 0.0
  %v1211 = vmax.f32 %v1155, 0.0
  %v1212 = vmax.f32 %v1156, 0.0
  %v1213 = vmax.f32 %v1157, 0.0
  %v1214 = vmax.f32 %v1158, 0.0
  %v1215 = vmax.f32 %v1159, 0.0
  %v1216 = vmax.f32 %v1160, 0.0
  %v1217 = vmax.f32 %v1161, 0.0
  %v1218 = vmax.f32 %v1162, 0.0
  %v1219 = vmax.f32 %v1163, 0.0
  %v1220 = vmax.f32 %v1164, 0.0
  %v1221 = vmax.f32 %v1165, 0.0
  %v1222 = vmax.f32 %v1166, 0.0
  %v1223 = vmax.f32 %v1167, 0.0
  %v1224 = vmax.f32 %v1168, 0.0
  %v1225 = vmax.f32 %v1169, 0.0
  %v1226 = vld [vmem:[%s3] sm:$0x7f]
  %v1228 = vrot.slane %v1226, 1
  %v1229 = vrot.slane %v1226, 2
  %v1230 = vrot.slane %v1226, 3
  %v1231 = vrot.slane %v1226, 4
  %v1232 = vrot.slane %v1226, 5
  %v1233 = vrot.slane %v1226, 6
  %v1240 = vmul.f32 %v1170, %v1226
  %v1241 = vmul.f32 %v1171, %v1228
  %v1242 = vmul.f32 %v1172, %v1229
  %v1243 = vmul.f32 %v1173, %v1230
  %v1244 = vmul.f32 %v1174, %v1231
  %v1245 = vmul.f32 %v1175, %v1232
  %v1246 = vmul.f32 %v1176, %v1233
  %v1247 = vmul.f32 %v1177, %v1226
  %v1248 = vmul.f32 %v1178, %v1228
  %v1249 = vmul.f32 %v1179, %v1229
  %v1250 = vmul.f32 %v1180, %v1230
  %v1251 = vmul.f32 %v1181, %v1231
  %v1252 = vmul.f32 %v1182, %v1232
  %v1253 = vmul.f32 %v1183, %v1233
  %v1254 = vmul.f32 %v1184, %v1226
  %v1255 = vmul.f32 %v1185, %v1228
  %v1256 = vmul.f32 %v1186, %v1229
  %v1257 = vmul.f32 %v1187, %v1230
  %v1258 = vmul.f32 %v1188, %v1231
  %v1259 = vmul.f32 %v1189, %v1232
  %v1260 = vmul.f32 %v1190, %v1233
  %v1261 = vmul.f32 %v1191, %v1226
  %v1262 = vmul.f32 %v1192, %v1228
  %v1263 = vmul.f32 %v1193, %v1229
  %v1264 = vmul.f32 %v1194, %v1230
  %v1265 = vmul.f32 %v1195, %v1231
  %v1266 = vmul.f32 %v1196, %v1232
  %v1267 = vmul.f32 %v1197, %v1233
  %v1268 = vmul.f32 %v1198, %v1226
  %v1269 = vmul.f32 %v1199, %v1228
  %v1270 = vmul.f32 %v1200, %v1229
  %v1271 = vmul.f32 %v1201, %v1230
  %v1272 = vmul.f32 %v1202, %v1231
  %v1273 = vmul.f32 %v1203, %v1232
  %v1274 = vmul.f32 %v1204, %v1233
  %v1275 = vmul.f32 %v1205, %v1226
  %v1276 = vmul.f32 %v1206, %v1228
  %v1277 = vmul.f32 %v1207, %v1229
  %v1278 = vmul.f32 %v1208, %v1230
  %v1279 = vmul.f32 %v1209, %v1231
  %v1280 = vmul.f32 %v1210, %v1232
  %v1281 = vmul.f32 %v1211, %v1233
  %v1282 = vmul.f32 %v1212, %v1226
  %v1283 = vmul.f32 %v1213, %v1228
  %v1284 = vmul.f32 %v1214, %v1229
  %v1285 = vmul.f32 %v1215, %v1230
  %v1286 = vmul.f32 %v1216, %v1231
  %v1287 = vmul.f32 %v1217, %v1232
  %v1288 = vmul.f32 %v1218, %v1233
  %v1289 = vmul.f32 %v1219, %v1226
  %v1290 = vmul.f32 %v1220, %v1228
  %v1291 = vmul.f32 %v1221, %v1229
  %v1292 = vmul.f32 %v1222, %v1230
  %v1293 = vmul.f32 %v1223, %v1231
  %v1294 = vmul.f32 %v1224, %v1232
  %v1295 = vmul.f32 %v1225, %v1233
  %1352 = vst [vmem:[#allocation1] ss:$9 sm:$0xff] %v1240
  %s1353 = scalar_lea.vmem [#allocation1], 1
  %1354 = vst [vmem:[%s1353] ss:$9 sm:$0xff] %v1241
  %s1355 = scalar_lea.vmem [#allocation1], 2
  %1356 = vst [vmem:[%s1355] ss:$9 sm:$0xff] %v1242
  %s1357 = scalar_lea.vmem [#allocation1], 3
  %1358 = vst [vmem:[%s1357] ss:$9 sm:$0xff] %v1243
  %s1359 = scalar_lea.vmem [#allocation1], 4
  %1360 = vst [vmem:[%s1359] ss:$9 sm:$0xff] %v1244
  %s1361 = scalar_lea.vmem [#allocation1], 5
  %1362 = vst [vmem:[%s1361] ss:$9 sm:$0xff] %v1245
  %s1363 = scalar_lea.vmem [#allocation1], 6
  %1364 = vst [vmem:[%s1363] ss:$9 sm:$0xff] %v1246
  %v1365 = vld [vmem:[#allocation1] sm:$0xff]
  %1366 = vst [vmem:[#allocation1] ss:$9 sm:$0xff] %v1247
  %1367 = vst [vmem:[%s1353] ss:$9 sm:$0xff] %v1248
  %1368 = vst [vmem:[%s1355] ss:$9 sm:$0xff] %v1249
  %1369 = vst [vmem:[%s1357] ss:$9 sm:$0xff] %v1250
  %1370 = vst [vmem:[%s1359] ss:$9 sm:$0xff] %v1251
  %1371 = vst [vmem:[%s1361] ss:$9 sm:$0xff] %v1252
  %1372 = vst [vmem:[%s1363] ss:$9 sm:$0xff] %v1253
  %v1373 = vld [vmem:[#allocation1] sm:$0xff]
  %1374 = vst [vmem:[#allocation1] ss:$9 sm:$0xff] %v1254
  %1375 = vst [vmem:[%s1353] ss:$9 sm:$0xff] %v1255
  %1376 = vst [vmem:[%s1355] ss:$9 sm:$0xff] %v1256
  %1377 = vst [vmem:[%s1357] ss:$9 sm:$0xff] %v1257
  %1378 = vst [vmem:[%s1359] ss:$9 sm:$0xff] %v1258
  %1379 = vst [vmem:[%s1361] ss:$9 sm:$0xff] %v1259
  %1380 = vst [vmem:[%s1363] ss:$9 sm:$0xff] %v1260
  %v1381 = vld [vmem:[#allocation1] sm:$0xff]
  %1382 = vst [vmem:[#allocation1] ss:$9 sm:$0xff] %v1261
  %1383 = vst [vmem:[%s1353] ss:$9 sm:$0xff] %v1262
  %1384 = vst [vmem:[%s1355] ss:$9 sm:$0xff] %v1263
  %1385 = vst [vmem:[%s1357] ss:$9 sm:$0xff] %v1264
  %1386 = vst [vmem:[%s1359] ss:$9 sm:$0xff] %v1265
  %1387 = vst [vmem:[%s1361] ss:$9 sm:$0xff] %v1266
  %1388 = vst [vmem:[%s1363] ss:$9 sm:$0xff] %v1267
  %v1389 = vld [vmem:[#allocation1] sm:$0xff]
  %1390 = vst [vmem:[#allocation1] ss:$9 sm:$0xff] %v1268
  %1391 = vst [vmem:[%s1353] ss:$9 sm:$0xff] %v1269
  %1392 = vst [vmem:[%s1355] ss:$9 sm:$0xff] %v1270
  %1393 = vst [vmem:[%s1357] ss:$9 sm:$0xff] %v1271
  %1394 = vst [vmem:[%s1359] ss:$9 sm:$0xff] %v1272
  %1395 = vst [vmem:[%s1361] ss:$9 sm:$0xff] %v1273
  %1396 = vst [vmem:[%s1363] ss:$9 sm:$0xff] %v1274
  %v1397 = vld [vmem:[#allocation1] sm:$0xff]
  %1398 = vst [vmem:[#allocation1] ss:$9 sm:$0xff] %v1275
  %1399 = vst [vmem:[%s1353] ss:$9 sm:$0xff] %v1276
  %1400 = vst [vmem:[%s1355] ss:$9 sm:$0xff] %v1277
  %1401 = vst [vmem:[%s1357] ss:$9 sm:$0xff] %v1278
  %1402 = vst [vmem:[%s1359] ss:$9 sm:$0xff] %v1279
  %1403 = vst [vmem:[%s1361] ss:$9 sm:$0xff] %v1280
  %1404 = vst [vmem:[%s1363] ss:$9 sm:$0xff] %v1281
  %v1405 = vld [vmem:[#allocation1] sm:$0xff]
  %1406 = vst [vmem:[#allocation1] ss:$9 sm:$0xff] %v1282
  %1407 = vst [vmem:[%s1353] ss:$9 sm:$0xff] %v1283
  %1408 = vst [vmem:[%s1355] ss:$9 sm:$0xff] %v1284
  %1409 = vst [vmem:[%s1357] ss:$9 sm:$0xff] %v1285
  %1410 = vst [vmem:[%s1359] ss:$9 sm:$0xff] %v1286
  %1411 = vst [vmem:[%s1361] ss:$9 sm:$0xff] %v1287
  %1412 = vst [vmem:[%s1363] ss:$9 sm:$0xff] %v1288
  %v1413 = vld [vmem:[#allocation1] sm:$0xff]
  %1414 = vst [vmem:[#allocation1] ss:$9 sm:$0xff] %v1289
  %1415 = vst [vmem:[%s1353] ss:$9 sm:$0xff] %v1290
  %1416 = vst [vmem:[%s1355] ss:$9 sm:$0xff] %v1291
  %1417 = vst [vmem:[%s1357] ss:$9 sm:$0xff] %v1292
  %1418 = vst [vmem:[%s1359] ss:$9 sm:$0xff] %v1293
  %1419 = vst [vmem:[%s1361] ss:$9 sm:$0xff] %v1294
  %1420 = vst [vmem:[%s1363] ss:$9 sm:$0xff] %v1295
  %v1421 = vld [vmem:[#allocation1] sm:$0xff]
  %vm1430 = vcmask 1046528
  %v1431 = vsel %vm1430, %v1365, -inf
  %v1432 = vrot.slane %v1431, 4
  %v1433 = vmax.f32 %v1431, %v1432
  %v1434 = vrot.slane %v1433, 2
  %v1435 = vmax.f32 %v1433, %v1434
  %v1436 = vrot.slane %v1435, 1
  %v1437 = vmax.f32 %v1435, %v1436
  %v1438 = vsel %vm1430, %v1373, -inf
  %v1439 = vrot.slane %v1438, 4
  %v1440 = vmax.f32 %v1438, %v1439
  %v1441 = vrot.slane %v1440, 2
  %v1442 = vmax.f32 %v1440, %v1441
  %v1443 = vrot.slane %v1442, 1
  %v1444 = vmax.f32 %v1442, %v1443
  %v1445 = vsel %vm1430, %v1381, -inf
  %v1446 = vrot.slane %v1445, 4
  %v1447 = vmax.f32 %v1445, %v1446
  %v1448 = vrot.slane %v1447, 2
  %v1449 = vmax.f32 %v1447, %v1448
  %v1450 = vrot.slane %v1449, 1
  %v1451 = vmax.f32 %v1449, %v1450
  %v1452 = vsel %vm1430, %v1389, -inf
  %v1453 = vrot.slane %v1452, 4
  %v1454 = vmax.f32 %v1452, %v1453
  %v1455 = vrot.slane %v1454, 2
  %v1456 = vmax.f32 %v1454, %v1455
  %v1457 = vrot.slane %v1456, 1
  %v1458 = vmax.f32 %v1456, %v1457
  %v1459 = vsel %vm1430, %v1397, -inf
  %v1460 = vrot.slane %v1459, 4
  %v1461 = vmax.f32 %v1459, %v1460
  %v1462 = vrot.slane %v1461, 2
  %v1463 = vmax.f32 %v1461, %v1462
  %v1464 = vrot.slane %v1463, 1
  %v1465 = vmax.f32 %v1463, %v1464
  %v1466 = vsel %vm1430, %v1405, -inf
  %v1467 = vrot.slane %v1466, 4
  %v1468 = vmax.f32 %v1466, %v1467
  %v1469 = vrot.slane %v1468, 2
  %v1470 = vmax.f32 %v1468, %v1469
  %v1471 = vrot.slane %v1470, 1
  %v1472 = vmax.f32 %v1470, %v1471
  %v1473 = vsel %vm1430, %v1413, -inf
  %v1474 = vrot.slane %v1473, 4
  %v1475 = vmax.f32 %v1473, %v1474
  %v1476 = vrot.slane %v1475, 2
  %v1477 = vmax.f32 %v1475, %v1476
  %v1478 = vrot.slane %v1477, 1
  %v1479 = vmax.f32 %v1477, %v1478
  %v1480 = vsel %vm1430, %v1421, -inf
  %v1481 = vrot.slane %v1480, 4
  %v1482 = vmax.f32 %v1480, %v1481
  %v1483 = vrot.slane %v1482, 2
  %v1484 = vmax.f32 %v1482, %v1483
  %v1485 = vrot.slane %v1484, 1
  %v1486 = vmax.f32 %v1484, %v1485
  %v1487 = vpack.c.bf16 %v1437, %v1437
  %v1488 = vpack.c.bf16 %v1444, %v1444
  %v1489 = vpack.c.bf16 %v1451, %v1451
  %v1490 = vpack.c.bf16 %v1458, %v1458
  %v1491 = vpack.c.bf16 %v1465, %v1465
  %v1492 = vpack.c.bf16 %v1472, %v1472
  %v1493 = vpack.c.bf16 %v1479, %v1479
  %v1494 = vpack.c.bf16 %v1486, %v1486
  %v1495 = vld [vmem:[%s4] sm:$0xf]
  %v1496 = vld [vmem:[%s4 + $0x4] sm:$0xf]
  %v1497 = vld [vmem:[%s4 + $0x8] sm:$0xf]
  %v1498 = vld [vmem:[%s4 + $0xc] sm:$0xf]
  %v1499 = vld [vmem:[%s4 + $0x10] sm:$0xf]
  %v1500 = vld [vmem:[%s4 + $0x14] sm:$0xf]
  %v1501 = vld [vmem:[%s4 + $0x18] sm:$0xf]
  %v1502 = vld [vmem:[%s4 + $0x1c] sm:$0xf]
  %v1503 = vld [vmem:[%s4 + $0x20] sm:$0xf]
  %v1504 = vld [vmem:[%s4 + $0x24] sm:$0xf]
  %v1505 = vld [vmem:[%s4 + $0x28] sm:$0xf]
  %v1506 = vld [vmem:[%s4 + $0x2c] sm:$0xf]
  %v1507 = vld [vmem:[%s4 + $0x30] sm:$0xf]
  %v1508 = vld [vmem:[%s4 + $0x34] sm:$0xf]
  %v1509 = vld [vmem:[%s4 + $0x38] sm:$0xf]
  %v1510 = vld [vmem:[%s4 + $0x3c] sm:$0xf]
  %v1511 = vld [vmem:[%s5] sm:$0x1]
  %v1513 = vperm.slane %v1511, 0
  %v1523 = vunpack.c.l.b16 %v1487
  %v1524 = vunpack.c.l.b16 %v1488
  %v1525 = vunpack.c.l.b16 %v1489
  %v1526 = vunpack.c.l.b16 %v1490
  %v1527 = vunpack.c.l.b16 %v1491
  %v1528 = vunpack.c.l.b16 %v1492
  %v1529 = vunpack.c.l.b16 %v1493
  %v1530 = vunpack.c.l.b16 %v1494
  %v1531 = vsel %vm82, %v1524, %v1523
  %v1532 = vsel %vm86, %v1525, %v1531
  %v1533 = vsel %vm90, %v1526, %v1532
  %vm1534 = vcmask 1044484
  %v1535 = vsel %vm1534, %v1527, %v1533
  %vm1536 = vcmask 1045509
  %v1537 = vsel %vm1536, %v1528, %v1535
  %vm1538 = vcmask 1046534
  %v1539 = vsel %vm1538, %v1529, %v1537
  %vm1540 = vcmask 1047559
  %v1541 = vsel %vm1540, %v1530, %v1539
  %v1542 = vpack.c.b16 %v1541, %v1541
  %v1560 = vunpack.c.l.b16 %v1495
  %v1561 = vunpack.c.l.b16 %v1496
  %v1562 = vunpack.c.l.b16 %v1497
  %v1563 = vunpack.c.l.b16 %v1498
  %v1564 = vunpack.c.l.b16 %v1499
  %v1565 = vunpack.c.l.b16 %v1500
  %v1566 = vunpack.c.l.b16 %v1501
  %v1567 = vunpack.c.l.b16 %v1502
  %v1568 = vunpack.c.l.b16 %v1503
  %v1569 = vunpack.c.l.b16 %v1504
  %v1570 = vunpack.c.l.b16 %v1505
  %v1571 = vunpack.c.l.b16 %v1506
  %v1572 = vunpack.c.l.b16 %v1507
  %v1573 = vunpack.c.l.b16 %v1508
  %v1574 = vunpack.c.l.b16 %v1509
  %v1575 = vunpack.c.l.b16 %v1510
  %v1576 = vpack.c.b16 %v1561, %v1560
  %v1577 = vpack.c.b16 %v1563, %v1562
  %v1578 = vpack.c.b16 %v1565, %v1564
  %v1579 = vpack.c.b16 %v1567, %v1566
  %v1580 = vpack.c.b16 %v1569, %v1568
  %v1581 = vpack.c.b16 %v1571, %v1570
  %v1582 = vpack.c.b16 %v1573, %v1572
  %v1583 = vpack.c.b16 %v1575, %v1574
  %1592 = vmatpush.bf16.msra.mxu0 %v1583
  %1593 = vmatpush.bf16.msra.mxu0 %v1582
  %1594 = vmatpush.bf16.msra.mxu0 %v1581
  %1595 = vmatpush.bf16.msra.mxu0 %v1580
  %1596 = vmatpush.bf16.msra.mxu0 %v1579
  %1597 = vmatpush.bf16.msra.mxu0 %v1578
  %1598 = vmatpush.bf16.msra.mxu0 %v1577
  %1599 = vmatpush.bf16.msra.mxu0 %v1576
  %1600 = vmatmul.bf16.gmra.mxu0 %v1542
  %v1601 = vpop.f32.mrf.mxu0
  %v1602 = vadd.f32 %v1513, %v1601
  %v1603 = vpop.f32.mrf.mxu0
  %1604 = vdwg.mxu0
  %v1605 = vmax.f32 %v1602, 0.0
  %v1606 = vld [vmem:[%s6] sm:$0xf]
  %v1607 = vld [vmem:[%s6 + $0x4] sm:$0xf]
  %v1608 = vld [vmem:[%s6 + $0x8] sm:$0xf]
  %v1609 = vld [vmem:[%s6 + $0xc] sm:$0xf]
  %v1610 = vld [vmem:[%s6 + $0x10] sm:$0xf]
  %v1611 = vld [vmem:[%s6 + $0x14] sm:$0xf]
  %v1612 = vld [vmem:[%s6 + $0x18] sm:$0xf]
  %v1613 = vld [vmem:[%s6 + $0x1c] sm:$0xf]
  %v1614 = vld [vmem:[%s6 + $0x20] sm:$0xf]
  %v1615 = vld [vmem:[%s6 + $0x24] sm:$0xf]
  %v1616 = vld [vmem:[%s6 + $0x28] sm:$0xf]
  %v1617 = vld [vmem:[%s6 + $0x2c] sm:$0xf]
  %v1618 = vld [vmem:[%s6 + $0x30] sm:$0xf]
  %v1619 = vld [vmem:[%s6 + $0x34] sm:$0xf]
  %v1620 = vld [vmem:[%s6 + $0x38] sm:$0xf]
  %v1621 = vld [vmem:[%s6 + $0x3c] sm:$0xf]
  %v1622 = vld [vmem:[%s7] sm:$0x1]
  %v1624 = vperm.slane %v1622, 0
  %v1642 = vunpack.c.l.b16 %v1606
  %v1643 = vunpack.c.l.b16 %v1607
  %v1644 = vunpack.c.l.b16 %v1608
  %v1645 = vunpack.c.l.b16 %v1609
  %v1646 = vunpack.c.l.b16 %v1610
  %v1647 = vunpack.c.l.b16 %v1611
  %v1648 = vunpack.c.l.b16 %v1612
  %v1649 = vunpack.c.l.b16 %v1613
  %v1650 = vunpack.c.l.b16 %v1614
  %v1651 = vunpack.c.l.b16 %v1615
  %v1652 = vunpack.c.l.b16 %v1616
  %v1653 = vunpack.c.l.b16 %v1617
  %v1654 = vunpack.c.l.b16 %v1618
  %v1655 = vunpack.c.l.b16 %v1619
  %v1656 = vunpack.c.l.b16 %v1620
  %v1657 = vunpack.c.l.b16 %v1621
  %v1658 = vpack.c.b16 %v1643, %v1642
  %v1659 = vpack.c.b16 %v1645, %v1644
  %v1660 = vpack.c.b16 %v1647, %v1646
  %v1661 = vpack.c.b16 %v1649, %v1648
  %v1662 = vpack.c.b16 %v1651, %v1650
  %v1663 = vpack.c.b16 %v1653, %v1652
  %v1664 = vpack.c.b16 %v1655, %v1654
  %v1665 = vpack.c.b16 %v1657, %v1656
  %1674 = vmatpush.bf16.msra.mxu0 %v1665
  %1675 = vmatpush.bf16.msra.mxu0 %v1664
  %1676 = vmatpush.bf16.msra.mxu0 %v1663
  %1677 = vmatpush.bf16.msra.mxu0 %v1662
  %1678 = vmatpush.bf16.msra.mxu0 %v1661
  %1679 = vmatpush.bf16.msra.mxu0 %v1660
  %1680 = vmatpush.bf16.msra.mxu0 %v1659
  %1681 = vmatpush.bf16.msra.mxu0 %v1658
  %1682 = vmatmul.bf16.gmra.mxu0 %v1542
  %v1683 = vpop.f32.mrf.mxu0
  %v1684 = vadd.f32 %v1624, %v1683
  %v1685 = vpop.f32.mrf.mxu0
  %1686 = vdwg.mxu0
  %v1687 = vxor.u32 %v1684, 2147483648
  %v1688 = vmul.f32 %v1687, 1.442695
  %v1689 = vpow.pop %v1688
  %v1690 = vadd.f32 %v1689, 1.0
  %v1691 = vrcp.pop %v1690
  %v1692 = vmul.f32 %v1690, %v1691
  %v1693 = vsub.f32 1.0, %v1692
  %v1694 = vmul.f32 %v1691, %v1693
  %v1695 = vadd.f32 %v1691, %v1694
  %vm1696 = vweird.f32 %v1690
  %vm1697 = vweird.f32 %v1691
  %vm1698 = vmor %vm1696, %vm1697
  %v1699 = vsel %vm1698, %v1691, %v1695
  %v1700 = vand.u32 2147483647, %v1690
  %vm1701 = vcmp.eq.f32.partialorder %v1700, 8.507059e+37
  %v1702 = vand.u32 %v1690, 2147483648
  %v1703 = vor.u32 1.1754944e-38, %v1702
  %v1704 = vsel %vm1701, %v1703, %v1699
  %v1705 = vmul.f32 1.0, %v1704
  %v1706 = vmul.f32 %v1605, %v1705
  %v1707 = vsub.f32 1.0, %v1705
  %v1716 = vsel %vm82, %v1444, %v1437
  %v1717 = vsel %vm86, %v1451, %v1716
  %v1718 = vsel %vm90, %v1458, %v1717
  %v1719 = vsel %vm1534, %v1465, %v1718
  %v1720 = vsel %vm1536, %v1472, %v1719
  %v1721 = vsel %vm1538, %v1479, %v1720
  %v1722 = vsel %vm1540, %v1486, %v1721
  %v1724 = vmul.f32 %v1707, %v1722
  %v1725 = vadd.f32 %v1706, %v1724
  %v1726 = vpack.c.bf16 %v1725, %v1725
  %v1727 = vld [vmem:[%s8] sm:$0xf]
  %v1728 = vld [vmem:[%s8 + $0x4] sm:$0xf]
  %v1729 = vld [vmem:[%s8 + $0x8] sm:$0xf]
  %v1730 = vld [vmem:[%s8 + $0xc] sm:$0xf]
  %v1731 = vld [vmem:[%s8 + $0x10] sm:$0xf]
  %v1732 = vld [vmem:[%s8 + $0x14] sm:$0xf]
  %v1733 = vld [vmem:[%s8 + $0x18] sm:$0xf]
  %v1734 = vld [vmem:[%s8 + $0x1c] sm:$0xf]
  %v1735 = vld [vmem:[%s8 + $0x20] sm:$0xf]
  %v1736 = vld [vmem:[%s8 + $0x24] sm:$0xf]
  %v1737 = vld [vmem:[%s8 + $0x28] sm:$0xf]
  %v1738 = vld [vmem:[%s8 + $0x2c] sm:$0xf]
  %v1739 = vld [vmem:[%s8 + $0x30] sm:$0xf]
  %v1740 = vld [vmem:[%s8 + $0x34] sm:$0xf]
  %v1741 = vld [vmem:[%s8 + $0x38] sm:$0xf]
  %v1742 = vld [vmem:[%s8 + $0x3c] sm:$0xf]
  %v1743 = vld [vmem:[%s9] sm:$0x1]
  %v1745 = vperm.slane %v1743, 0
  %v1763 = vunpack.c.l.b16 %v1727
  %v1764 = vunpack.c.l.b16 %v1728
  %v1765 = vunpack.c.l.b16 %v1729
  %v1766 = vunpack.c.l.b16 %v1730
  %v1767 = vunpack.c.l.b16 %v1731
  %v1768 = vunpack.c.l.b16 %v1732
  %v1769 = vunpack.c.l.b16 %v1733
  %v1770 = vunpack.c.l.b16 %v1734
  %v1771 = vunpack.c.l.b16 %v1735
  %v1772 = vunpack.c.l.b16 %v1736
  %v1773 = vunpack.c.l.b16 %v1737
  %v1774 = vunpack.c.l.b16 %v1738
  %v1775 = vunpack.c.l.b16 %v1739
  %v1776 = vunpack.c.l.b16 %v1740
  %v1777 = vunpack.c.l.b16 %v1741
  %v1778 = vunpack.c.l.b16 %v1742
  %v1779 = vpack.c.b16 %v1764, %v1763
  %v1780 = vpack.c.b16 %v1766, %v1765
  %v1781 = vpack.c.b16 %v1768, %v1767
  %v1782 = vpack.c.b16 %v1770, %v1769
  %v1783 = vpack.c.b16 %v1772, %v1771
  %v1784 = vpack.c.b16 %v1774, %v1773
  %v1785 = vpack.c.b16 %v1776, %v1775
  %v1786 = vpack.c.b16 %v1778, %v1777
  %1795 = vmatpush.bf16.msra.mxu0 %v1786
  %1796 = vmatpush.bf16.msra.mxu0 %v1785
  %1797 = vmatpush.bf16.msra.mxu0 %v1784
  %1798 = vmatpush.bf16.msra.mxu0 %v1783
  %1799 = vmatpush.bf16.msra.mxu0 %v1782
  %1800 = vmatpush.bf16.msra.mxu0 %v1781
  %1801 = vmatpush.bf16.msra.mxu0 %v1780
  %1802 = vmatpush.bf16.msra.mxu0 %v1779
  %1803 = vmatmul.bf16.gmra.mxu0 %v1726
  %v1804 = vpop.f32.mrf.mxu0
  %v1805 = vadd.f32 %v1745, %v1804
  %v1806 = vpop.f32.mrf.mxu0
  %1807 = vdwg.mxu0
  %1808 = vst [vmem:[%s10] sm:$0xff] %v1805
  // Predicated region
  $region42: #{discriminator_forward.1} parent=0 // pred_check
    _
  $region43: #{discriminator_forward.1} parent=0 // pred_check_branch
    %1810 = sbr.rel (0) target = $region45
  $region44: #{discriminator_forward.1} parent=0 // pred_region
    _
  $region45: #{discriminator_forward.1} parent=0 // pred_fallthru
    _
  // Predicated region
  $region46: #{discriminator_forward.1} parent=0 // pred_check
    _
  $region47: #{discriminator_forward.1} parent=0 // pred_check_branch
    %1812 = sbr.rel (0) target = $region49
  $region48: #{discriminator_forward.1} parent=0 // pred_region
    _
  $region49: #{discriminator_forward.1} parent=0 // pred_fallthru
    _

</llo_original>
